<compile_context>
chip_gen: v5e
topology: v5e:2x2
jax: 0.10.0
libtpu: 0.0.40
codegen_flags: <defaults>
</compile_context>

<pallas_src>
import functools

import jax
import jax.numpy as jnp
from jax.experimental import pallas as pl
from jax.experimental.pallas import tpu as pltpu


# ----------------------------------------------------------------------------
# Kernel
# ----------------------------------------------------------------------------
def bottleneck_kernel(
    x_ref,      # (Nb, H, W, Cin_p)            bf16 input block
    w1_ref,     # (Cin_p, width_p)             bf16, BN1 scale folded in
    b1_ref,     # (1, width_p)                 f32
    w2_ref,     # (3, 3*width_p, width_p)      bf16, dy-packed HWIO, BN2 folded
    b2_ref,     # (1, width_p)                 f32
    w3_ref,     # (width_p, Cout_p)            bf16, BN3 scale folded in
    b3_ref,     # (1, Cout_p)                  f32
    out_ref,    # (Nb, H, W, Cout_p)           bf16 output block
    pad_ref,    # scratch (Nb, H+2, W+2, width_p) bf16 zero-haloed activations
):
    Nb, H, W, Cin_p = x_ref.shape
    Cm = w1_ref.shape[1]
    Cout_p = w3_ref.shape[1]

    x = x_ref[...]                                   # (Nb, H, W, Cin_p) bf16
    # Flatten (Nb, H) -> M rows for the channel matmuls (leading-dim reshape,
    # layout-free since the minor (W, C) dims are untouched).
    xr = x.reshape(Nb * H, W, Cin_p)

    # ---- conv1 (1x1, BN1 folded) + bias + relu : channel matmul, f32 acc ----
    h1 = jnp.einsum("hwc,cd->hwd", xr, w1_ref[...],
                    preferred_element_type=jnp.float32)
    h1 = jnp.maximum(h1 + b1_ref[...], 0.0)          # (Nb*H, W, Cm) f32

    # ---- refresh only the 1-wide zero halo (interior overwritten below) ----
    # Per-step (not program_id==0) so it stays correct if the parallel batch
    # axis is ever sharded across TensorCores.
    pad_ref[:, 0:1, :, :] = jnp.zeros((Nb, 1, W + 2, Cm), pad_ref.dtype)
    pad_ref[:, H + 1:H + 2, :, :] = jnp.zeros((Nb, 1, W + 2, Cm), pad_ref.dtype)
    pad_ref[:, 1:H + 1, 0:1, :] = jnp.zeros((Nb, H, 1, Cm), pad_ref.dtype)
    pad_ref[:, 1:H + 1, W + 1:W + 2, :] = jnp.zeros((Nb, H, 1, Cm), pad_ref.dtype)

    # stage relu(bn1(conv1)) into the padded scratch in bf16
    pad_ref[:, 1:H + 1, 1:W + 1, :] = (
        h1.astype(pad_ref.dtype).reshape(Nb, H, W, Cm))

    # ---- conv2 (3x3, pad=1, stride=1, BN2 folded) + bias + relu ------------
    # 3 dx-shifted column loads; for each, the 3 dy windows (free leading-dim
    # slices) are lane-concatenated and hit the MXU as one K=3*Cm matmul
    # against the dy-packed weight slab w2_ref[dx].
    acc = None
    for dx in range(3):                              # static -> unrolled
        col = pad_ref[:, :, dx:dx + W, :]            # (Nb, H+2, W, Cm)
        win = jnp.concatenate(
            [col[:, 0:H], col[:, 1:H + 1], col[:, 2:H + 2]],
            axis=-1)                                 # (Nb, H, W, 3*Cm)
        winr = win.reshape(Nb * H, W, 3 * Cm)
        tap = jnp.einsum("hwc,cd->hwd", winr, w2_ref[dx],
                         preferred_element_type=jnp.float32)
        acc = tap if acc is None else acc + tap
    h2 = jnp.maximum(acc + b2_ref[...], 0.0)         # (Nb*H, W, Cm) f32

    # ---- conv3 (1x1, BN3 folded) + bias + identity residual + relu ---------
    h3 = jnp.einsum("hwc,cd->hwd", h2.astype(x.dtype), w3_ref[...],
                    preferred_element_type=jnp.float32)
    out = jnp.maximum(h3 + b3_ref[...] + xr.astype(jnp.float32), 0.0)
    out_ref[...] = out.reshape(Nb, H, W, Cout_p).astype(out_ref.dtype)


# ----------------------------------------------------------------------------
# One-time parameter preparation: fold BN, pad channels to 128, pack the 3x3
# weight per dx with the dy taps stacked along input channels, cast to bf16.
# ----------------------------------------------------------------------------
def _round_up(x, m):
    return (x + m - 1) // m * m


def fold_bn(gamma, beta, mean, var, eps=1e-5):
    scale = gamma * jax.lax.rsqrt(var + eps)
    bias = beta - mean * scale
    return scale, bias


def prepare_params(w1, bn1, w2, bn2, w3, bn3, eps=1e-5, lane=128):
    """Fold eval-mode BN into the conv weights (scale) + per-channel bias,
    pad every channel dim to a multiple of `lane`, pack w2 per dx with the
    dy taps stacked along input channels, cast weights to bf16."""
    s1, b1 = fold_bn(*bn1, eps)
    s2, b2 = fold_bn(*bn2, eps)
    s3, b3 = fold_bn(*bn3, eps)

    cin, width = w1.shape
    cout = w3.shape[1]
    cin_p = _round_up(cin, lane)
    width_p = _round_up(width, lane)
    cout_p = _round_up(cout, lane)

    w1f = jnp.zeros((cin_p, width_p), jnp.float32)
    w1f = w1f.at[:cin, :width].set(w1 * s1[None, :])

    w2f = jnp.zeros((3, 3, width_p, width_p), jnp.float32)   # (dy, dx, ci, co)
    w2f = w2f.at[:, :, :width, :width].set(w2 * s2)
    # pack: (dx, dy*width_p + ci, co)   -- matches lane-concat order in-kernel
    w2p = jnp.transpose(w2f, (1, 0, 2, 3)).reshape(3, 3 * width_p, width_p)

    w3f = jnp.zeros((width_p, cout_p), jnp.float32)
    w3f = w3f.at[:width, :cout].set(w3 * s3[None, :])

    b1f = jnp.zeros((1, width_p), jnp.float32).at[0, :width].set(b1)
    b2f = jnp.zeros((1, width_p), jnp.float32).at[0, :width].set(b2)
    b3f = jnp.zeros((1, cout_p), jnp.float32).at[0, :cout].set(b3)

    return (w1f.astype(jnp.bfloat16), b1f,
            w2p.astype(jnp.bfloat16), b2f,
            w3f.astype(jnp.bfloat16), b3f)


# ----------------------------------------------------------------------------
# Block-size / VMEM arithmetic
# ----------------------------------------------------------------------------
def _vmem_estimate(nb, h, w, cin_p, width_p, cout_p):
    bf16, f32 = 2, 4
    m = nb * h * w
    blocks = 2 * m * cin_p * bf16 + 2 * m * cout_p * bf16      # in/out x2 bufs
    scratch = nb * (h + 2) * (w + 2) * width_p * bf16          # padded acts
    weights = (2 * (cin_p * width_p + 9 * width_p * width_p
                    + width_p * cout_p) * bf16
               + 2 * (2 * width_p + cout_p) * f32)             # weights x2 bufs
    interm = m * (width_p * f32            # h1
                  + 3 * width_p * bf16     # fused 3x3 window
                  + 2 * width_p * f32      # conv2 acc + h2
                  + cout_p * f32           # h3 / pre-relu out
                  + cin_p * f32)           # residual in f32
    return blocks + scratch + weights + interm


def _pick_batch_block(n, h, w, cin_p, width_p, cout_p, vmem_budget,
                      target_rows=256):
    """Smallest divisor of n whose flattened matmul M-dim reaches
    ~target_rows, subject to the VMEM budget."""
    best = 1
    for d in range(1, n + 1):
        if n % d:
            continue
        if _vmem_estimate(d, h, w, cin_p, width_p, cout_p) > vmem_budget:
            break
        best = d
        if d * h * w >= target_rows:
            break
    return best


# ----------------------------------------------------------------------------
# Wrapper
# ----------------------------------------------------------------------------
@functools.partial(jax.jit, static_argnames=("out_channels",))
def bottleneck_pallas(x_nhwc, w1, b1, w2, b2, w3, b3, *, out_channels):
    N, H, W, Cin = x_nhwc.shape
    Cin_p, width_p = w1.shape
    Cout_p = w3.shape[1]
    # identity residual (downsample=None, stride=1) => Cin == Cout
    assert Cin_p == Cout_p and Cin <= Cin_p and out_channels == Cin

    # lane-dense bf16 input; skip the channel-pad pass when already aligned
    if Cin == Cin_p:
        x_p = x_nhwc.astype(jnp.bfloat16)
    else:
        x_p = jnp.zeros((N, H, W, Cin_p), jnp.bfloat16)
        x_p = x_p.at[..., :Cin].set(x_nhwc.astype(jnp.bfloat16))

    # VMEM budget: ~85% of physical capacity (128 MiB v5e/v6e, 64 MiB v7x)
    try:
        vmem_cap = int(pltpu.get_tpu_info().vmem_capacity_bytes)
    except Exception:
        vmem_cap = 128 * 1024 * 1024
    vmem_budget = int(0.85 * vmem_cap)

    Nb = _pick_batch_block(N, H, W, Cin_p, width_p, Cout_p, vmem_budget)
    est = _vmem_estimate(Nb, H, W, Cin_p, width_p, Cout_p)
    vmem_limit = int(min(max(int(1.5 * est), 32 * 1024 * 1024), vmem_budget))

    out = pl.pallas_call(
        bottleneck_kernel,
        out_shape=jax.ShapeDtypeStruct((N, H, W, Cout_p), jnp.bfloat16),
        grid_spec=pltpu.PrefetchScalarGridSpec(
            num_scalar_prefetch=0,
            grid=(N // Nb,),
            in_specs=[
                pl.BlockSpec((Nb, H, W, Cin_p), lambda n: (n, 0, 0, 0)),
                pl.BlockSpec((Cin_p, width_p), lambda n: (0, 0)),
                pl.BlockSpec((1, width_p), lambda n: (0, 0)),
                pl.BlockSpec((3, 3 * width_p, width_p), lambda n: (0, 0, 0)),
                pl.BlockSpec((1, width_p), lambda n: (0, 0)),
                pl.BlockSpec((width_p, Cout_p), lambda n: (0, 0)),
                pl.BlockSpec((1, Cout_p), lambda n: (0, 0)),
            ],
            out_specs=pl.BlockSpec((Nb, H, W, Cout_p), lambda n: (n, 0, 0, 0)),
            scratch_shapes=[
                pltpu.VMEM((Nb, H + 2, W + 2, width_p), jnp.bfloat16)],
        ),
        compiler_params=pltpu.CompilerParams(
            dimension_semantics=("parallel",),
            vmem_limit_bytes=vmem_limit),
    )(x_p, w1, b1, w2, b2, w3, b3)

    if Cout_p == out_channels:
        return out
    return out[..., :out_channels]


# ----------------------------------------------------------------------------
# Plain-JAX reference (lax.conv), used only to sanity-check the kernel.
# ----------------------------------------------------------------------------
def bottleneck_reference(x, w1, b1, w2, b2, w3, b3):
    dn = ("NHWC", "HWIO", "NHWC")
    conv = lambda a, w, pad: jax.lax.conv_general_dilated(
        a, w, window_strides=(1, 1), padding=pad, dimension_numbers=dn)
    h = jax.nn.relu(conv(x, w1[None, None], "VALID") + b1)
    h = jax.nn.relu(conv(h, w2, "SAME") + b2)
    h = conv(h, w3[None, None], "VALID") + b3
    return jax.nn.relu(h + x)


if __name__ == "__main__":
    # Shapes consistent with Bottleneck(inplanes=16, planes=4):
    # width = planes * (64/64) * 1 = 4, out channels = planes*4 = 16 = inplanes,
    # stride = 1, downsample = None -> identity residual is shape-compatible.
    N, inplanes, H, W = 2, 16, 8, 8
    planes = 4
    width = planes
    cout = planes * 4

    key = jax.random.PRNGKey(0)
    ks = jax.random.split(key, 8)

    # PyTorch-style input is NCHW; transpose once to the kernel's NHWC layout.
    x_nchw = jax.random.normal(ks[0], (N, inplanes, H, W), jnp.float32)
    x_nhwc = jnp.transpose(x_nchw, (0, 2, 3, 1))

    # Deterministic synthetic parameters (conv weights stored channels-last).
    w1 = 0.1 * jax.random.normal(ks[1], (inplanes, width), jnp.float32)
    w2 = 0.1 * jax.random.normal(ks[2], (3, 3, width, width), jnp.float32)
    w3 = 0.1 * jax.random.normal(ks[3], (width, cout), jnp.float32)

    def bn_params(k, c):
        k1, k2, k3, k4 = jax.random.split(k, 4)
        gamma = 1.0 + 0.1 * jax.random.normal(k1, (c,), jnp.float32)
        beta = 0.1 * jax.random.normal(k2, (c,), jnp.float32)
        mean = 0.1 * jax.random.normal(k3, (c,), jnp.float32)
        var = 0.5 + jax.random.uniform(k4, (c,), jnp.float32)
        return gamma, beta, mean, var

    bn1 = bn_params(ks[4], width)
    bn2 = bn_params(ks[5], width)
    bn3 = bn_params(ks[6], cout)

    # One-time prep: fold BN, pad channels to 128, pack w2 per dx, cast bf16.
    w1p, b1p, w2p, b2p, w3p, b3p = prepare_params(w1, bn1, w2, bn2, w3, bn3)

    out = bottleneck_pallas(x_nhwc, w1p, b1p, w2p, b2p, w3p, b3p,
                            out_channels=cout)
    out = jax.block_until_ready(out)

    # Reference sees exactly the same bf16-rounded inputs / folded weights the
    # kernel uses; remaining deltas come from bf16 h1/h2 staging and the bf16
    # output store (ref output is bf16-rounded too for a fair comparison).
    width_p = w1p.shape[1]
    f32 = lambda a: a.astype(jnp.float32)
    x_q = f32(x_nhwc.astype(jnp.bfloat16))
    w2_hwio = jnp.transpose(w2p.reshape(3, 3, width_p, width_p), (1, 0, 2, 3))
    ref = bottleneck_reference(
        x_q,
        f32(w1p[:inplanes, :width]), b1p[0, :width],
        f32(w2_hwio[:, :, :width, :width]), b2p[0, :width],
        f32(w3p[:width, :cout]), b3p[0, :cout])
    ref_q = f32(ref.astype(jnp.bfloat16))

    assert out.shape == (N, H, W, cout)
    max_err = float(jnp.max(jnp.abs(f32(out) - ref_q)))
    assert max_err < 3e-2, f"max abs err {max_err}"
    print("KERNEL_OK")
</pallas_src>

<mosaic_0001>
module attributes {stable_mosaic.version = 11 : i64} {
  func.func @bottleneck_kernel(%arg0: i32, %arg1: memref<2x8x8x128xbf16, #tpu.memory_space<vmem>>, %arg2: memref<128x128xbf16, #tpu.memory_space<vmem>>, %arg3: memref<1x128xf32, #tpu.memory_space<vmem>>, %arg4: memref<3x384x128xbf16, #tpu.memory_space<vmem>>, %arg5: memref<1x128xf32, #tpu.memory_space<vmem>>, %arg6: memref<128x128xbf16, #tpu.memory_space<vmem>>, %arg7: memref<1x128xf32, #tpu.memory_space<vmem>>, %arg8: memref<2x8x8x128xbf16, #tpu.memory_space<vmem>>, %arg9: memref<2x10x10x128xbf16, #tpu.memory_space<vmem>>) attributes {dimension_semantics = [#tpu.dimension_semantics<parallel>], iteration_bounds = array<i64: 1>, scalar_prefetch = 0 : i64, scratch_operands = 1 : i64, tpu.core_type = #tpu.core_type<tc>, window_params = [{transform_indices = @transform_0, window_bounds = array<i64: 2, 8, 8, 128>}, {pipeline_mode = #tpu.pipeline_mode<synchronous>, transform_indices = @transform_1, window_bounds = array<i64: 128, 128>}, {pipeline_mode = #tpu.pipeline_mode<synchronous>, transform_indices = @transform_2, window_bounds = array<i64: 1, 128>}, {pipeline_mode = #tpu.pipeline_mode<synchronous>, transform_indices = @transform_3, window_bounds = array<i64: 3, 384, 128>}, {pipeline_mode = #tpu.pipeline_mode<synchronous>, transform_indices = @transform_4, window_bounds = array<i64: 1, 128>}, {pipeline_mode = #tpu.pipeline_mode<synchronous>, transform_indices = @transform_5, window_bounds = array<i64: 128, 128>}, {pipeline_mode = #tpu.pipeline_mode<synchronous>, transform_indices = @transform_6, window_bounds = array<i64: 1, 128>}, {transform_indices = @transform_7, window_bounds = array<i64: 2, 8, 8, 128>}]} {
    %c0 = arith.constant 0 : index
    %c0_0 = arith.constant 0 : index
    %c0_1 = arith.constant 0 : index
    %c0_2 = arith.constant 0 : index
    %0 = vector.load %arg1[%c0, %c0_0, %c0_1, %c0_2] : memref<2x8x8x128xbf16, #tpu.memory_space<vmem>>, vector<2x8x8x128xbf16>
    %1 = vector.shape_cast %0 : vector<2x8x8x128xbf16> to vector<16x8x128xbf16>
    %c0_3 = arith.constant 0 : index
    %c0_4 = arith.constant 0 : index
    %2 = vector.load %arg2[%c0_3, %c0_4] : memref<128x128xbf16, #tpu.memory_space<vmem>>, vector<128x128xbf16>
    "tpu.trace_start"() <{level = 10 : i32, message = "hwc,cd->hwd"}> : () -> ()
    %cst = arith.constant dense<0.000000e+00> : vector<16x8x128xf32>
    %3 = tpu.matmul %1, %2, %cst {dimension_numbers = #tpu.dot_dimension_numbers<[2], [0], [0, 1], [1], [0, 0, 0, 1, 1, 1], [], []>} : vector<16x8x128xbf16>, vector<128x128xbf16>, vector<16x8x128xf32> -> vector<16x8x128xf32>
    "tpu.trace_stop"() : () -> ()
    %c0_5 = arith.constant 0 : index
    %c0_6 = arith.constant 0 : index
    %4 = vector.load %arg3[%c0_5, %c0_6] : memref<1x128xf32, #tpu.memory_space<vmem>>, vector<1x128xf32>
    %5 = vector.shape_cast %4 : vector<1x128xf32> to vector<1x1x128xf32>
    %6 = vector.broadcast %5 : vector<1x1x128xf32> to vector<16x8x128xf32>
    %7 = arith.addf %3, %6 : vector<16x8x128xf32>
    %cst_7 = arith.constant 0.000000e+00 : f32
    %8 = vector.broadcast %cst_7 : f32 to vector<16x8x128xf32>
    %9 = arith.maximumf %7, %8 : vector<16x8x128xf32>
    %cst_8 = arith.constant 0.000000e+00 : bf16
    %10 = vector.broadcast %cst_8 : bf16 to vector<2x1x10x128xbf16>
    %c0_9 = arith.constant 0 : index
    %c0_10 = arith.constant 0 : index
    %c0_11 = arith.constant 0 : index
    %c0_12 = arith.constant 0 : index
    %11 = vector.load %arg9[%c0_9, %c0_10, %c0_11, %c0_12] : memref<2x10x10x128xbf16, #tpu.memory_space<vmem>>, vector<2x1x10x128xbf16>
    tpu.vector_store %arg9[%c0_9, %c0_10, %c0_11, %c0_12], %10 {strides = array<i32>} : memref<2x10x10x128xbf16, #tpu.memory_space<vmem>>, vector<2x1x10x128xbf16>,
    %cst_13 = arith.constant 0.000000e+00 : bf16
    %12 = vector.broadcast %cst_13 : bf16 to vector<2x1x10x128xbf16>
    %c0_14 = arith.constant 0 : index
    %c9 = arith.constant 9 : index
    %c0_15 = arith.constant 0 : index
    %c0_16 = arith.constant 0 : index
    %13 = vector.load %arg9[%c0_14, %c9, %c0_15, %c0_16] : memref<2x10x10x128xbf16, #tpu.memory_space<vmem>>, vector<2x1x10x128xbf16>
    tpu.vector_store %arg9[%c0_14, %c9, %c0_15, %c0_16], %12 {strides = array<i32>} : memref<2x10x10x128xbf16, #tpu.memory_space<vmem>>, vector<2x1x10x128xbf16>,
    %cst_17 = arith.constant 0.000000e+00 : bf16
    %14 = vector.broadcast %cst_17 : bf16 to vector<2x8x1x128xbf16>
    %c0_18 = arith.constant 0 : index
    %c1 = arith.constant 1 : index
    %c0_19 = arith.constant 0 : index
    %c0_20 = arith.constant 0 : index
    %15 = vector.load %arg9[%c0_18, %c1, %c0_19, %c0_20] : memref<2x10x10x128xbf16, #tpu.memory_space<vmem>>, vector<2x8x1x128xbf16>
    tpu.vector_store %arg9[%c0_18, %c1, %c0_19, %c0_20], %14 {strides = array<i32>} : memref<2x10x10x128xbf16, #tpu.memory_space<vmem>>, vector<2x8x1x128xbf16>,
    %cst_21 = arith.constant 0.000000e+00 : bf16
    %16 = vector.broadcast %cst_21 : bf16 to vector<2x8x1x128xbf16>
    %c0_22 = arith.constant 0 : index
    %c1_23 = arith.constant 1 : index
    %c9_24 = arith.constant 9 : index
    %c0_25 = arith.constant 0 : index
    %17 = vector.load %arg9[%c0_22, %c1_23, %c9_24, %c0_25] : memref<2x10x10x128xbf16, #tpu.memory_space<vmem>>, vector<2x8x1x128xbf16>
    tpu.vector_store %arg9[%c0_22, %c1_23, %c9_24, %c0_25], %16 {strides = array<i32>} : memref<2x10x10x128xbf16, #tpu.memory_space<vmem>>, vector<2x8x1x128xbf16>,
    %18 = arith.truncf %9 : vector<16x8x128xf32> to vector<16x8x128xbf16>
    %19 = vector.shape_cast %18 : vector<16x8x128xbf16> to vector<2x8x8x128xbf16>
    %c0_26 = arith.constant 0 : index
    %c1_27 = arith.constant 1 : index
    %c1_28 = arith.constant 1 : index
    %c0_29 = arith.constant 0 : index
    %20 = vector.load %arg9[%c0_26, %c1_27, %c1_28, %c0_29] : memref<2x10x10x128xbf16, #tpu.memory_space<vmem>>, vector<2x8x8x128xbf16>
    tpu.vector_store %arg9[%c0_26, %c1_27, %c1_28, %c0_29], %19 {strides = array<i32>} : memref<2x10x10x128xbf16, #tpu.memory_space<vmem>>, vector<2x8x8x128xbf16>,
    %c0_30 = arith.constant 0 : index
    %c0_31 = arith.constant 0 : index
    %c0_32 = arith.constant 0 : index
    %c0_33 = arith.constant 0 : index
    %21 = vector.load %arg9[%c0_30, %c0_31, %c0_32, %c0_33] : memref<2x10x10x128xbf16, #tpu.memory_space<vmem>>, vector<2x10x8x128xbf16>
    %22 = vector.extract_strided_slice %21 {offsets = [0, 0, 0, 0], sizes = [2, 8, 8, 128], strides = [1, 1, 1, 1]} : vector<2x10x8x128xbf16> to vector<2x8x8x128xbf16>
    %23 = vector.extract_strided_slice %21 {offsets = [0, 1, 0, 0], sizes = [2, 8, 8, 128], strides = [1, 1, 1, 1]} : vector<2x10x8x128xbf16> to vector<2x8x8x128xbf16>
    %24 = vector.extract_strided_slice %21 {offsets = [0, 2, 0, 0], sizes = [2, 8, 8, 128], strides = [1, 1, 1, 1]} : vector<2x10x8x128xbf16> to vector<2x8x8x128xbf16>
    %25 = tpu.concatenate %22, %23, %24 in 3 : vector<2x8x8x128xbf16>, vector<2x8x8x128xbf16>, vector<2x8x8x128xbf16> -> vector<2x8x8x384xbf16>
    %26 = vector.shape_cast %25 : vector<2x8x8x384xbf16> to vector<16x8x384xbf16>
    %c0_34 = arith.constant 0 : index
    %c0_35 = arith.constant 0 : index
    %c0_36 = arith.constant 0 : index
    %27 = vector.load %arg4[%c0_34, %c0_35, %c0_36] : memref<3x384x128xbf16, #tpu.memory_space<vmem>>, vector<1x384x128xbf16>
    %28 = vector.shape_cast %27 : vector<1x384x128xbf16> to vector<384x128xbf16>
    "tpu.trace_start"() <{level = 10 : i32, message = "hwc,cd->hwd"}> : () -> ()
    %cst_37 = arith.constant dense<0.000000e+00> : vector<16x8x128xf32>
    %29 = tpu.matmul %26, %28, %cst_37 {dimension_numbers = #tpu.dot_dimension_numbers<[2], [0], [0, 1], [1], [0, 0, 0, 1, 1, 1], [], []>} : vector<16x8x384xbf16>, vector<384x128xbf16>, vector<16x8x128xf32> -> vector<16x8x128xf32>
    "tpu.trace_stop"() : () -> ()
    %c0_38 = arith.constant 0 : index
    %c0_39 = arith.constant 0 : index
    %c1_40 = arith.constant 1 : index
    %c0_41 = arith.constant 0 : index
    %30 = vector.load %arg9[%c0_38, %c0_39, %c1_40, %c0_41] : memref<2x10x10x128xbf16, #tpu.memory_space<vmem>>, vector<2x10x8x128xbf16>
    %31 = vector.extract_strided_slice %30 {offsets = [0, 0, 0, 0], sizes = [2, 8, 8, 128], strides = [1, 1, 1, 1]} : vector<2x10x8x128xbf16> to vector<2x8x8x128xbf16>
    %32 = vector.extract_strided_slice %30 {offsets = [0, 1, 0, 0], sizes = [2, 8, 8, 128], strides = [1, 1, 1, 1]} : vector<2x10x8x128xbf16> to vector<2x8x8x128xbf16>
    %33 = vector.extract_strided_slice %30 {offsets = [0, 2, 0, 0], sizes = [2, 8, 8, 128], strides = [1, 1, 1, 1]} : vector<2x10x8x128xbf16> to vector<2x8x8x128xbf16>
    %34 = tpu.concatenate %31, %32, %33 in 3 : vector<2x8x8x128xbf16>, vector<2x8x8x128xbf16>, vector<2x8x8x128xbf16> -> vector<2x8x8x384xbf16>
    %35 = vector.shape_cast %34 : vector<2x8x8x384xbf16> to vector<16x8x384xbf16>
    %c1_42 = arith.constant 1 : index
    %c0_43 = arith.constant 0 : index
    %c0_44 = arith.constant 0 : index
    %36 = vector.load %arg4[%c1_42, %c0_43, %c0_44] : memref<3x384x128xbf16, #tpu.memory_space<vmem>>, vector<1x384x128xbf16>
    %37 = vector.shape_cast %36 : vector<1x384x128xbf16> to vector<384x128xbf16>
    "tpu.trace_start"() <{level = 10 : i32, message = "hwc,cd->hwd"}> : () -> ()
    %cst_45 = arith.constant dense<0.000000e+00> : vector<16x8x128xf32>
    %38 = tpu.matmul %35, %37, %cst_45 {dimension_numbers = #tpu.dot_dimension_numbers<[2], [0], [0, 1], [1], [0, 0, 0, 1, 1, 1], [], []>} : vector<16x8x384xbf16>, vector<384x128xbf16>, vector<16x8x128xf32> -> vector<16x8x128xf32>
    "tpu.trace_stop"() : () -> ()
    %39 = arith.addf %29, %38 : vector<16x8x128xf32>
    %c0_46 = arith.constant 0 : index
    %c0_47 = arith.constant 0 : index
    %c2 = arith.constant 2 : index
    %c0_48 = arith.constant 0 : index
    %40 = vector.load %arg9[%c0_46, %c0_47, %c2, %c0_48] : memref<2x10x10x128xbf16, #tpu.memory_space<vmem>>, vector<2x10x8x128xbf16>
    %41 = vector.extract_strided_slice %40 {offsets = [0, 0, 0, 0], sizes = [2, 8, 8, 128], strides = [1, 1, 1, 1]} : vector<2x10x8x128xbf16> to vector<2x8x8x128xbf16>
    %42 = vector.extract_strided_slice %40 {offsets = [0, 1, 0, 0], sizes = [2, 8, 8, 128], strides = [1, 1, 1, 1]} : vector<2x10x8x128xbf16> to vector<2x8x8x128xbf16>
    %43 = vector.extract_strided_slice %40 {offsets = [0, 2, 0, 0], sizes = [2, 8, 8, 128], strides = [1, 1, 1, 1]} : vector<2x10x8x128xbf16> to vector<2x8x8x128xbf16>
    %44 = tpu.concatenate %41, %42, %43 in 3 : vector<2x8x8x128xbf16>, vector<2x8x8x128xbf16>, vector<2x8x8x128xbf16> -> vector<2x8x8x384xbf16>
    %45 = vector.shape_cast %44 : vector<2x8x8x384xbf16> to vector<16x8x384xbf16>
    %c2_49 = arith.constant 2 : index
    %c0_50 = arith.constant 0 : index
    %c0_51 = arith.constant 0 : index
    %46 = vector.load %arg4[%c2_49, %c0_50, %c0_51] : memref<3x384x128xbf16, #tpu.memory_space<vmem>>, vector<1x384x128xbf16>
    %47 = vector.shape_cast %46 : vector<1x384x128xbf16> to vector<384x128xbf16>
    "tpu.trace_start"() <{level = 10 : i32, message = "hwc,cd->hwd"}> : () -> ()
    %cst_52 = arith.constant dense<0.000000e+00> : vector<16x8x128xf32>
    %48 = tpu.matmul %45, %47, %cst_52 {dimension_numbers = #tpu.dot_dimension_numbers<[2], [0], [0, 1], [1], [0, 0, 0, 1, 1, 1], [], []>} : vector<16x8x384xbf16>, vector<384x128xbf16>, vector<16x8x128xf32> -> vector<16x8x128xf32>
    "tpu.trace_stop"() : () -> ()
    %49 = arith.addf %39, %48 : vector<16x8x128xf32>
    %c0_53 = arith.constant 0 : index
    %c0_54 = arith.constant 0 : index
    %50 = vector.load %arg5[%c0_53, %c0_54] : memref<1x128xf32, #tpu.memory_space<vmem>>, vector<1x128xf32>
    %51 = vector.shape_cast %50 : vector<1x128xf32> to vector<1x1x128xf32>
    %52 = vector.broadcast %51 : vector<1x1x128xf32> to vector<16x8x128xf32>
    %53 = arith.addf %49, %52 : vector<16x8x128xf32>
    %cst_55 = arith.constant 0.000000e+00 : f32
    %54 = vector.broadcast %cst_55 : f32 to vector<16x8x128xf32>
    %55 = arith.maximumf %53, %54 : vector<16x8x128xf32>
    %56 = arith.truncf %55 : vector<16x8x128xf32> to vector<16x8x128xbf16>
    %c0_56 = arith.constant 0 : index
    %c0_57 = arith.constant 0 : index
    %57 = vector.load %arg6[%c0_56, %c0_57] : memref<128x128xbf16, #tpu.memory_space<vmem>>, vector<128x128xbf16>
    "tpu.trace_start"() <{level = 10 : i32, message = "hwc,cd->hwd"}> : () -> ()
    %cst_58 = arith.constant dense<0.000000e+00> : vector<16x8x128xf32>
    %58 = tpu.matmul %56, %57, %cst_58 {dimension_numbers = #tpu.dot_dimension_numbers<[2], [0], [0, 1], [1], [0, 0, 0, 1, 1, 1], [], []>} : vector<16x8x128xbf16>, vector<128x128xbf16>, vector<16x8x128xf32> -> vector<16x8x128xf32>
    "tpu.trace_stop"() : () -> ()
    %c0_59 = arith.constant 0 : index
    %c0_60 = arith.constant 0 : index
    %59 = vector.load %arg7[%c0_59, %c0_60] : memref<1x128xf32, #tpu.memory_space<vmem>>, vector<1x128xf32>
    %60 = vector.shape_cast %59 : vector<1x128xf32> to vector<1x1x128xf32>
    %61 = vector.broadcast %60 : vector<1x1x128xf32> to vector<16x8x128xf32>
    %62 = arith.addf %58, %61 : vector<16x8x128xf32>
    %63 = arith.extf %1 : vector<16x8x128xbf16> to vector<16x8x128xf32>
    %64 = arith.addf %62, %63 : vector<16x8x128xf32>
    %cst_61 = arith.constant 0.000000e+00 : f32
    %65 = vector.broadcast %cst_61 : f32 to vector<16x8x128xf32>
    %66 = arith.maximumf %64, %65 : vector<16x8x128xf32>
    %67 = vector.shape_cast %66 : vector<16x8x128xf32> to vector<2x8x8x128xf32>
    %68 = arith.truncf %67 : vector<2x8x8x128xf32> to vector<2x8x8x128xbf16>
    %c0_62 = arith.constant 0 : index
    %c0_63 = arith.constant 0 : index
    %c0_64 = arith.constant 0 : index
    %c0_65 = arith.constant 0 : index
    %69 = vector.load %arg8[%c0_62, %c0_63, %c0_64, %c0_65] : memref<2x8x8x128xbf16, #tpu.memory_space<vmem>>, vector<2x8x8x128xbf16>
    tpu.vector_store %arg8[%c0_62, %c0_63, %c0_64, %c0_65], %68 {strides = array<i32>} : memref<2x8x8x128xbf16, #tpu.memory_space<vmem>>, vector<2x8x8x128xbf16>,
    return
  }
  func.func @transform_0(%arg0: i32) -> (i32, i32, i32, i32) {
    %c0_i32 = arith.constant 0 : i32
    %c0_i32_0 = arith.constant 0 : i32
    %c0_i32_1 = arith.constant 0 : i32
    %c0_i32_2 = arith.constant 0 : i32
    return %arg0, %c0_i32, %c0_i32_0, %c0_i32_1 : i32, i32, i32, i32
  }
  func.func @transform_1(%arg0: i32) -> (i32, i32) {
    %c0_i32 = arith.constant 0 : i32
    %c0_i32_0 = arith.constant 0 : i32
    %c0_i32_1 = arith.constant 0 : i32
    return %c0_i32, %c0_i32_0 : i32, i32
  }
  func.func @transform_2(%arg0: i32) -> (i32, i32) {
    %c0_i32 = arith.constant 0 : i32
    %c0_i32_0 = arith.constant 0 : i32
    %c0_i32_1 = arith.constant 0 : i32
    return %c0_i32, %c0_i32_0 : i32, i32
  }
  func.func @transform_3(%arg0: i32) -> (i32, i32, i32) {
    %c0_i32 = arith.constant 0 : i32
    %c0_i32_0 = arith.constant 0 : i32
    %c0_i32_1 = arith.constant 0 : i32
    %c0_i32_2 = arith.constant 0 : i32
    return %c0_i32, %c0_i32_0, %c0_i32_1 : i32, i32, i32
  }
  func.func @transform_4(%arg0: i32) -> (i32, i32) {
    %c0_i32 = arith.constant 0 : i32
    %c0_i32_0 = arith.constant 0 : i32
    %c0_i32_1 = arith.constant 0 : i32
    return %c0_i32, %c0_i32_0 : i32, i32
  }
  func.func @transform_5(%arg0: i32) -> (i32, i32) {
    %c0_i32 = arith.constant 0 : i32
    %c0_i32_0 = arith.constant 0 : i32
    %c0_i32_1 = arith.constant 0 : i32
    return %c0_i32, %c0_i32_0 : i32, i32
  }
  func.func @transform_6(%arg0: i32) -> (i32, i32) {
    %c0_i32 = arith.constant 0 : i32
    %c0_i32_0 = arith.constant 0 : i32
    %c0_i32_1 = arith.constant 0 : i32
    return %c0_i32, %c0_i32_0 : i32, i32
  }
  func.func @transform_7(%arg0: i32) -> (i32, i32, i32, i32) {
    %c0_i32 = arith.constant 0 : i32
    %c0_i32_0 = arith.constant 0 : i32
    %c0_i32_1 = arith.constant 0 : i32
    %c0_i32_2 = arith.constant 0 : i32
    return %arg0, %c0_i32, %c0_i32_0, %c0_i32_1 : i32, i32, i32, i32
  }
}

</mosaic_0001>

<llo_original>
// kernel: bottleneck_pallas.1
$region0: #{bottleneck_pallas.1}
  #allocation0 [shape = 'u32[]', space=smem, size = 0x4, offset = 0x4, fixed_abs, tag = 'smem constant byte address 0x4 - core index']
  #allocation1 [shape = 'u32[72,128]{1,0:T(1,128)}', space=vmem, size = 0x9000, scoped, tag = 'internal scratch']
  #allocation2 [shape = 'bf16[2,10,10,128]{3,2,1,0:T(8,128)(2,1)}', space=vmem, size = 0x14000, scoped, tag = 'scratch operand']
  %s0 = inlined_call_operand.vmem [shape: bf16[2,8,8,128], index: 0, kind: input, shape index: {}]
  %s1 = inlined_call_operand.vmem [shape: bf16[128,128], index: 1, kind: input, shape index: {}]
  %s2 = inlined_call_operand.vmem [shape: f32[1,128], index: 2, kind: input, shape index: {}]
  %s3 = inlined_call_operand.hbm [shape: bf16[3,384,128], index: 3, kind: input, shape index: {}]
  %s4 = inlined_call_operand.vmem [shape: f32[1,128], index: 4, kind: input, shape index: {}]
  %s5 = inlined_call_operand.vmem [shape: bf16[128,128], index: 5, kind: input, shape index: {}]
  %s6 = inlined_call_operand.vmem [shape: f32[1,128], index: 6, kind: input, shape index: {}]
  %s7 = inlined_call_operand.hbm [shape: bf16[2,8,8,128], index: 7, kind: output, shape index: {}]
  %s8 = sld [smem:[#allocation0]]
  $region42: #{bottleneck_pallas.1} parent=0
    _
  %s10 = ssub.s32 1, %s8
  %s11 = scalar_select 0, %s10, %s8
  $region1: #{bottleneck_pallas.1} parent=0
    #allocation3 [shape = 'u8[294912]{0}', space=vmem, size = 0x48000, scoped, tag = 'input window, operand 3, single buffered']
    #allocation4 [shape = 's32[1]{0}', space=sflag, size = 0x4, scoped, tag = 'scoped memory for bottleneck_pallas.1']
    #allocation5 [shape = 's32[1]{0}', space=sflag, size = 0x4, scoped, tag = 'scoped memory for bottleneck_pallas.1']
    #allocation6 [shape = 'u8[32768]{0}', space=vmem, size = 0x8000, scoped, tag = 'output window, operand 0, single buffered']
    %12 = vsyncpa [#allocation4], 0
    %13 = vsyncpa [#allocation5], 0
    // Predicated region
    $region2: #{bottleneck_pallas.1} parent=1 // pred_check
      _
    $region3: #{bottleneck_pallas.1} parent=1 // pred_check_branch
      %15 = sbr.rel (0) target = $region5
    $region4: #{bottleneck_pallas.1} parent=1 // pred_region
      _
    $region5: #{bottleneck_pallas.1} parent=1 // pred_fallthru
      _
    // Predicated region
    $region6: #{bottleneck_pallas.1} parent=1 // pred_check
      _
    $region7: #{bottleneck_pallas.1} parent=1 // pred_check_branch
      %17 = sbr.rel (0) target = $region9
    $region8: #{bottleneck_pallas.1} parent=1 // pred_region
      _
    $region9: #{bottleneck_pallas.1} parent=1 // pred_fallthru
      _
    // Predicated region
    $region10: #{bottleneck_pallas.1} parent=1 // pred_check
      _
    $region11: #{bottleneck_pallas.1} parent=1 // pred_check_branch
      %19 = sbr.rel (0) target = $region13
    $region12: #{bottleneck_pallas.1} parent=1 // pred_region
      _
    $region13: #{bottleneck_pallas.1} parent=1 // pred_fallthru
      _
    // Predicated region
    $region14: #{bottleneck_pallas.1} parent=1 // pred_check
      _
    $region15: #{bottleneck_pallas.1} parent=1 // pred_check_branch
      %21 = sbr.rel (0) target = $region17
    $region16: #{bottleneck_pallas.1} parent=1 // pred_region
      %23 = vsyncadd [#allocation4], 0
      %s24 = sshll.u32 %s3, 4
      %s25 = int_to_ptr.hbm [resolvable:$true] %s24
      %s26 = sshll.u32 [#allocation3], 4
      %s27 = int_to_ptr.vmem [resolvable:$true] %s26
      %32 = dma.hbm_to_vmem [thread:$0]  %s25, 9216, %s27, [#allocation4], 64, 64, 4
    $region17: #{bottleneck_pallas.1} parent=1 // pred_fallthru
      _
    // Predicated region
    $region18: #{bottleneck_pallas.1} parent=1 // pred_check
      _
    $region19: #{bottleneck_pallas.1} parent=1 // pred_check_branch
      %34 = sbr.rel (0) target = $region21
    $region20: #{bottleneck_pallas.1} parent=1 // pred_region
      _
    $region21: #{bottleneck_pallas.1} parent=1 // pred_fallthru
      _
    // Predicated region
    $region22: #{bottleneck_pallas.1} parent=1 // pred_check
      _
    $region23: #{bottleneck_pallas.1} parent=1 // pred_check_branch
      %36 = sbr.rel (0) target = $region25
    $region24: #{bottleneck_pallas.1} parent=1 // pred_region
      _
    $region25: #{bottleneck_pallas.1} parent=1 // pred_fallthru
      _
    // Predicated region
    $region26: #{bottleneck_pallas.1} parent=1 // pred_check
      _
    $region27: #{bottleneck_pallas.1} parent=1 // pred_check_branch
      %38 = sbr.rel (0) target = $region29
    $region28: #{bottleneck_pallas.1} parent=1 // pred_region
      _
    $region29: #{bottleneck_pallas.1} parent=1 // pred_fallthru
      _
    // Predicated region
    $region30: #{bottleneck_pallas.1} parent=1 // pred_check
      _
    $region31: #{bottleneck_pallas.1} parent=1 // pred_check_branch
      %40 = sbr.rel (0) target = $region33
    $region32: #{bottleneck_pallas.1} parent=1 // pred_region
      %42 = dma.done [#allocation4], 9216
    $region33: #{bottleneck_pallas.1} parent=1 // pred_fallthru
      _
    %v44 = vld [vmem:[%s0] sm:$0xf]
    %v45 = vld [vmem:[%s0 + $0x4] sm:$0xf]
    %v46 = vld [vmem:[%s0 + $0x8] sm:$0xf]
    %v47 = vld [vmem:[%s0 + $0xc] sm:$0xf]
    %v48 = vld [vmem:[%s0 + $0x10] sm:$0xf]
    %v49 = vld [vmem:[%s0 + $0x14] sm:$0xf]
    %v50 = vld [vmem:[%s0 + $0x18] sm:$0xf]
    %v51 = vld [vmem:[%s0 + $0x1c] sm:$0xf]
    %v52 = vld [vmem:[%s0 + $0x20] sm:$0xf]
    %v53 = vld [vmem:[%s0 + $0x24] sm:$0xf]
    %v54 = vld [vmem:[%s0 + $0x28] sm:$0xf]
    %v55 = vld [vmem:[%s0 + $0x2c] sm:$0xf]
    %v56 = vld [vmem:[%s0 + $0x30] sm:$0xf]
    %v57 = vld [vmem:[%s0 + $0x34] sm:$0xf]
    %v58 = vld [vmem:[%s0 + $0x38] sm:$0xf]
    %v59 = vld [vmem:[%s0 + $0x3c] sm:$0xf]
    %v60 = vld [vmem:[%s1] sm:$0xf]
    %v61 = vld [vmem:[%s1 + $0x4] sm:$0xf]
    %v62 = vld [vmem:[%s1 + $0x8] sm:$0xf]
    %v63 = vld [vmem:[%s1 + $0xc] sm:$0xf]
    %v64 = vld [vmem:[%s1 + $0x10] sm:$0xf]
    %v65 = vld [vmem:[%s1 + $0x14] sm:$0xf]
    %v66 = vld [vmem:[%s1 + $0x18] sm:$0xf]
    %v67 = vld [vmem:[%s1 + $0x1c] sm:$0xf]
    %v68 = vld [vmem:[%s1 + $0x20] sm:$0xf]
    %v69 = vld [vmem:[%s1 + $0x24] sm:$0xf]
    %v70 = vld [vmem:[%s1 + $0x28] sm:$0xf]
    %v71 = vld [vmem:[%s1 + $0x2c] sm:$0xf]
    %v72 = vld [vmem:[%s1 + $0x30] sm:$0xf]
    %v73 = vld [vmem:[%s1 + $0x34] sm:$0xf]
    %v74 = vld [vmem:[%s1 + $0x38] sm:$0xf]
    %v75 = vld [vmem:[%s1 + $0x3c] sm:$0xf]
    %v76 = vld [vmem:[%s2] sm:$0x1]
    %v78 = vperm.slane %v76, 0
    %v96 = vunpack.c.l.b16 %v44
    %v97 = vunpack.c.l.b16 %v45
    %v98 = vunpack.c.l.b16 %v46
    %v99 = vunpack.c.l.b16 %v47
    %v100 = vunpack.c.l.b16 %v48
    %v101 = vunpack.c.l.b16 %v49
    %v102 = vunpack.c.l.b16 %v50
    %v103 = vunpack.c.l.b16 %v51
    %v104 = vunpack.c.l.b16 %v52
    %v105 = vunpack.c.l.b16 %v53
    %v106 = vunpack.c.l.b16 %v54
    %v107 = vunpack.c.l.b16 %v55
    %v108 = vunpack.c.l.b16 %v56
    %v109 = vunpack.c.l.b16 %v57
    %v110 = vunpack.c.l.b16 %v58
    %v111 = vunpack.c.l.b16 %v59
    %v112 = vpack.c.b16 %v97, %v96
    %v113 = vpack.c.b16 %v99, %v98
    %v114 = vpack.c.b16 %v101, %v100
    %v115 = vpack.c.b16 %v103, %v102
    %v116 = vpack.c.b16 %v105, %v104
    %v117 = vpack.c.b16 %v107, %v106
    %v118 = vpack.c.b16 %v109, %v108
    %v119 = vpack.c.b16 %v111, %v110
    %v144 = vunpack.c.l.b16 %v60
    %v145 = vunpack.c.l.b16 %v61
    %v146 = vunpack.c.l.b16 %v62
    %v147 = vunpack.c.l.b16 %v63
    %v148 = vunpack.c.l.b16 %v64
    %v149 = vunpack.c.l.b16 %v65
    %v150 = vunpack.c.l.b16 %v66
    %v151 = vunpack.c.l.b16 %v67
    %v152 = vunpack.c.l.b16 %v68
    %v153 = vunpack.c.l.b16 %v69
    %v154 = vunpack.c.l.b16 %v70
    %v155 = vunpack.c.l.b16 %v71
    %v156 = vunpack.c.l.b16 %v72
    %v157 = vunpack.c.l.b16 %v73
    %v158 = vunpack.c.l.b16 %v74
    %v159 = vunpack.c.l.b16 %v75
    %v160 = vpack.c.b16 %v145, %v144
    %v161 = vpack.c.b16 %v147, %v146
    %v162 = vpack.c.b16 %v149, %v148
    %v163 = vpack.c.b16 %v151, %v150
    %v164 = vpack.c.b16 %v153, %v152
    %v165 = vpack.c.b16 %v155, %v154
    %v166 = vpack.c.b16 %v157, %v156
    %v167 = vpack.c.b16 %v159, %v158
    %176 = vmatpush.bf16.msra.mxu0 %v167
    %177 = vmatpush.bf16.msra.mxu0 %v166
    %178 = vmatpush.bf16.msra.mxu0 %v165
    %179 = vmatpush.bf16.msra.mxu0 %v164
    %180 = vmatpush.bf16.msra.mxu0 %v163
    %181 = vmatpush.bf16.msra.mxu0 %v162
    %182 = vmatpush.bf16.msra.mxu0 %v161
    %183 = vmatpush.bf16.msra.mxu0 %v160
    %184 = vmatmul.bf16.gmra.mxu0 %v112
    %v185 = vpop.f32.mrf.mxu0
    %v186 = vadd.f32 %v78, %v185
    %v187 = vpop.f32.mrf.mxu0
    %v188 = vadd.f32 %v78, %v187
    %189 = vmatmul.bf16.gmra.mxu0 %v113
    %v190 = vpop.f32.mrf.mxu0
    %v191 = vadd.f32 %v78, %v190
    %v192 = vpop.f32.mrf.mxu0
    %v193 = vadd.f32 %v78, %v192
    %194 = vmatmul.bf16.gmra.mxu0 %v114
    %v195 = vpop.f32.mrf.mxu0
    %v196 = vadd.f32 %v78, %v195
    %v197 = vpop.f32.mrf.mxu0
    %v198 = vadd.f32 %v78, %v197
    %199 = vmatmul.bf16.gmra.mxu0 %v115
    %v200 = vpop.f32.mrf.mxu0
    %v201 = vadd.f32 %v78, %v200
    %v202 = vpop.f32.mrf.mxu0
    %v203 = vadd.f32 %v78, %v202
    %204 = vmatmul.bf16.gmra.mxu0 %v116
    %v205 = vpop.f32.mrf.mxu0
    %v206 = vadd.f32 %v78, %v205
    %v207 = vpop.f32.mrf.mxu0
    %v208 = vadd.f32 %v78, %v207
    %209 = vmatmul.bf16.gmra.mxu0 %v117
    %v210 = vpop.f32.mrf.mxu0
    %v211 = vadd.f32 %v78, %v210
    %v212 = vpop.f32.mrf.mxu0
    %v213 = vadd.f32 %v78, %v212
    %214 = vmatmul.bf16.gmra.mxu0 %v118
    %v215 = vpop.f32.mrf.mxu0
    %v216 = vadd.f32 %v78, %v215
    %v217 = vpop.f32.mrf.mxu0
    %v218 = vadd.f32 %v78, %v217
    %219 = vmatmul.bf16.gmra.mxu0 %v119
    %v220 = vpop.f32.mrf.mxu0
    %v221 = vadd.f32 %v78, %v220
    %v222 = vpop.f32.mrf.mxu0
    %v223 = vadd.f32 %v78, %v222
    %224 = vdwg.mxu0
    %v225 = vmax.f32 %v186, 0.0
    %v226 = vmax.f32 %v188, 0.0
    %v227 = vmax.f32 %v191, 0.0
    %v228 = vmax.f32 %v193, 0.0
    %v229 = vmax.f32 %v196, 0.0
    %v230 = vmax.f32 %v198, 0.0
    %v231 = vmax.f32 %v201, 0.0
    %v232 = vmax.f32 %v203, 0.0
    %v233 = vmax.f32 %v206, 0.0
    %v234 = vmax.f32 %v208, 0.0
    %v235 = vmax.f32 %v211, 0.0
    %v236 = vmax.f32 %v213, 0.0
    %v237 = vmax.f32 %v216, 0.0
    %v238 = vmax.f32 %v218, 0.0
    %v239 = vmax.f32 %v221, 0.0
    %v240 = vmax.f32 %v223, 0.0
    %241 = vst [vmem:[#allocation2] sm:$0xf] 0
    %242 = vst [vmem:[#allocation2 + $0x4] sm:$0x1] 0
    %243 = vst [vmem:[#allocation2 + $0x50] sm:$0xf] 0
    %244 = vst [vmem:[#allocation2 + $0x54] sm:$0x1] 0
    %s245 = scalar_lea.vmem [#allocation2], 72
    %246 = vst [vmem:[%s245] sm:$0xf] 0
    %247 = vst [vmem:[%s245 + $0x4] sm:$0x1] 0
    %248 = vst [vmem:[%s245 + $0x50] sm:$0xf] 0
    %249 = vst [vmem:[%s245 + $0x54] sm:$0x1] 0
    %s250 = scalar_lea.vmem [#allocation2], 8
    %vm251 = vcmask 1040384
    %vm252 = vsmask.f32 256
    %vm253 = vmand %vm251, %vm252
    %v254 = vld [vmem:[%s250] sm:$0x1]
    %v255 = vsel %vm253, 0, %v254
    %256 = vst [vmem:[%s250] sm:$0x1] %v255
    %v257 = vld [vmem:[%s250 + $0x8] sm:$0x1]
    %v258 = vsel %vm253, 0, %v257
    %259 = vst [vmem:[%s250 + $0x8] sm:$0x1] %v258
    %v260 = vld [vmem:[%s250 + $0x10] sm:$0x1]
    %v261 = vsel %vm253, 0, %v260
    %262 = vst [vmem:[%s250 + $0x10] sm:$0x1] %v261
    %v263 = vld [vmem:[%s250 + $0x18] sm:$0x1]
    %v264 = vsel %vm253, 0, %v263
    %265 = vst [vmem:[%s250 + $0x18] sm:$0x1] %v264
    %v266 = vld [vmem:[%s250 + $0x20] sm:$0x1]
    %v267 = vsel %vm253, 0, %v266
    %268 = vst [vmem:[%s250 + $0x20] sm:$0x1] %v267
    %v269 = vld [vmem:[%s250 + $0x28] sm:$0x1]
    %v270 = vsel %vm253, 0, %v269
    %271 = vst [vmem:[%s250 + $0x28] sm:$0x1] %v270
    %v272 = vld [vmem:[%s250 + $0x30] sm:$0x1]
    %v273 = vsel %vm253, 0, %v272
    %274 = vst [vmem:[%s250 + $0x30] sm:$0x1] %v273
    %v275 = vld [vmem:[%s250 + $0x38] sm:$0x1]
    %v276 = vsel %vm253, 0, %v275
    %277 = vst [vmem:[%s250 + $0x38] sm:$0x1] %v276
    %v278 = vld [vmem:[%s250 + $0x50] sm:$0x1]
    %v279 = vsel %vm253, 0, %v278
    %280 = vst [vmem:[%s250 + $0x50] sm:$0x1] %v279
    %v281 = vld [vmem:[%s250 + $0x58] sm:$0x1]
    %v282 = vsel %vm253, 0, %v281
    %283 = vst [vmem:[%s250 + $0x58] sm:$0x1] %v282
    %v284 = vld [vmem:[%s250 + $0x60] sm:$0x1]
    %v285 = vsel %vm253, 0, %v284
    %286 = vst [vmem:[%s250 + $0x60] sm:$0x1] %v285
    %v287 = vld [vmem:[%s250 + $0x68] sm:$0x1]
    %v288 = vsel %vm253, 0, %v287
    %289 = vst [vmem:[%s250 + $0x68] sm:$0x1] %v288
    %v290 = vld [vmem:[%s250 + $0x70] sm:$0x1]
    %v291 = vsel %vm253, 0, %v290
    %292 = vst [vmem:[%s250 + $0x70] sm:$0x1] %v291
    %v293 = vld [vmem:[%s250 + $0x78] sm:$0x1]
    %v294 = vsel %vm253, 0, %v293
    %295 = vst [vmem:[%s250 + $0x78] sm:$0x1] %v294
    %v296 = vld [vmem:[%s250 + $0x80] sm:$0x1]
    %v297 = vsel %vm253, 0, %v296
    %298 = vst [vmem:[%s250 + $0x80] sm:$0x1] %v297
    %v299 = vld [vmem:[%s250 + $0x88] sm:$0x1]
    %v300 = vsel %vm253, 0, %v299
    %301 = vst [vmem:[%s250 + $0x88] sm:$0x1] %v300
    %vm302 = vsmask.f32 7938
    %vm303 = vmand %vm251, %vm302
    %v304 = vld [vmem:[%s250 + $0x4] sm:$0x1]
    %v305 = vsel %vm303, 0, %v304
    %306 = vst [vmem:[%s250 + $0x4] sm:$0x1] %v305
    %v307 = vld [vmem:[%s250 + $0xc] sm:$0x1]
    %v308 = vsel %vm303, 0, %v307
    %309 = vst [vmem:[%s250 + $0xc] sm:$0x1] %v308
    %v310 = vld [vmem:[%s250 + $0x14] sm:$0x1]
    %v311 = vsel %vm303, 0, %v310
    %312 = vst [vmem:[%s250 + $0x14] sm:$0x1] %v311
    %v313 = vld [vmem:[%s250 + $0x1c] sm:$0x1]
    %v314 = vsel %vm303, 0, %v313
    %315 = vst [vmem:[%s250 + $0x1c] sm:$0x1] %v314
    %v316 = vld [vmem:[%s250 + $0x24] sm:$0x1]
    %v317 = vsel %vm303, 0, %v316
    %318 = vst [vmem:[%s250 + $0x24] sm:$0x1] %v317
    %v319 = vld [vmem:[%s250 + $0x2c] sm:$0x1]
    %v320 = vsel %vm303, 0, %v319
    %321 = vst [vmem:[%s250 + $0x2c] sm:$0x1] %v320
    %v322 = vld [vmem:[%s250 + $0x34] sm:$0x1]
    %v323 = vsel %vm303, 0, %v322
    %324 = vst [vmem:[%s250 + $0x34] sm:$0x1] %v323
    %v325 = vld [vmem:[%s250 + $0x3c] sm:$0x1]
    %v326 = vsel %vm303, 0, %v325
    %327 = vst [vmem:[%s250 + $0x3c] sm:$0x1] %v326
    %v328 = vld [vmem:[%s250 + $0x54] sm:$0x1]
    %v329 = vsel %vm303, 0, %v328
    %330 = vst [vmem:[%s250 + $0x54] sm:$0x1] %v329
    %v331 = vld [vmem:[%s250 + $0x5c] sm:$0x1]
    %v332 = vsel %vm303, 0, %v331
    %333 = vst [vmem:[%s250 + $0x5c] sm:$0x1] %v332
    %v334 = vld [vmem:[%s250 + $0x64] sm:$0x1]
    %v335 = vsel %vm303, 0, %v334
    %336 = vst [vmem:[%s250 + $0x64] sm:$0x1] %v335
    %v337 = vld [vmem:[%s250 + $0x6c] sm:$0x1]
    %v338 = vsel %vm303, 0, %v337
    %339 = vst [vmem:[%s250 + $0x6c] sm:$0x1] %v338
    %v340 = vld [vmem:[%s250 + $0x74] sm:$0x1]
    %v341 = vsel %vm303, 0, %v340
    %342 = vst [vmem:[%s250 + $0x74] sm:$0x1] %v341
    %v343 = vld [vmem:[%s250 + $0x7c] sm:$0x1]
    %v344 = vsel %vm303, 0, %v343
    %345 = vst [vmem:[%s250 + $0x7c] sm:$0x1] %v344
    %v346 = vld [vmem:[%s250 + $0x84] sm:$0x1]
    %v347 = vsel %vm303, 0, %v346
    %348 = vst [vmem:[%s250 + $0x84] sm:$0x1] %v347
    %v349 = vld [vmem:[%s250 + $0x8c] sm:$0x1]
    %v350 = vsel %vm303, 0, %v349
    %351 = vst [vmem:[%s250 + $0x8c] sm:$0x1] %v350
    %v352 = vpack.c.bf16 %v225, %v225
    %v353 = vpack.c.bf16 %v226, %v226
    %v354 = vpack.c.bf16 %v227, %v227
    %v355 = vpack.c.bf16 %v228, %v228
    %v356 = vpack.c.bf16 %v229, %v229
    %v357 = vpack.c.bf16 %v230, %v230
    %v358 = vpack.c.bf16 %v231, %v231
    %v359 = vpack.c.bf16 %v232, %v232
    %v360 = vpack.c.bf16 %v233, %v233
    %v361 = vpack.c.bf16 %v234, %v234
    %v362 = vpack.c.bf16 %v235, %v235
    %v363 = vpack.c.bf16 %v236, %v236
    %v364 = vpack.c.bf16 %v237, %v237
    %v365 = vpack.c.bf16 %v238, %v238
    %v366 = vpack.c.bf16 %v239, %v239
    %v367 = vpack.c.bf16 %v240, %v240
    %v369 = vshrl.u32 %v352, 16
    %v371 = vrot.slane %v369, 7
    %v372 = vshll.u32 %v352, 16
    %v374 = vor.u32 %v371, %v372
    %v375 = vrot.slane %v371, 4
    %v377 = vshrl.u32 %v353, 16
    %v379 = vrot.slane %v377, 7
    %v380 = vshll.u32 %v353, 16
    %v382 = vor.u32 %v379, %v380
    %v383 = vrot.slane %v379, 4
    %v385 = vshrl.u32 %v354, 16
    %v387 = vrot.slane %v385, 7
    %v388 = vshll.u32 %v354, 16
    %v390 = vor.u32 %v387, %v388
    %v391 = vrot.slane %v387, 4
    %v393 = vshrl.u32 %v355, 16
    %v395 = vrot.slane %v393, 7
    %v396 = vshll.u32 %v355, 16
    %v398 = vor.u32 %v395, %v396
    %v399 = vrot.slane %v395, 4
    %v401 = vshrl.u32 %v356, 16
    %v403 = vrot.slane %v401, 7
    %v404 = vshll.u32 %v356, 16
    %v406 = vor.u32 %v403, %v404
    %v407 = vrot.slane %v403, 4
    %v409 = vshrl.u32 %v357, 16
    %v411 = vrot.slane %v409, 7
    %v412 = vshll.u32 %v357, 16
    %v414 = vor.u32 %v411, %v412
    %v415 = vrot.slane %v411, 4
    %v417 = vshrl.u32 %v358, 16
    %v419 = vrot.slane %v417, 7
    %v420 = vshll.u32 %v358, 16
    %v422 = vor.u32 %v419, %v420
    %v423 = vrot.slane %v419, 4
    %v425 = vshrl.u32 %v359, 16
    %v427 = vrot.slane %v425, 7
    %v428 = vshll.u32 %v359, 16
    %v430 = vor.u32 %v427, %v428
    %v431 = vrot.slane %v427, 4
    %v433 = vshrl.u32 %v360, 16
    %v435 = vrot.slane %v433, 7
    %v436 = vshll.u32 %v360, 16
    %v438 = vor.u32 %v435, %v436
    %v439 = vrot.slane %v435, 4
    %v441 = vshrl.u32 %v361, 16
    %v443 = vrot.slane %v441, 7
    %v444 = vshll.u32 %v361, 16
    %v446 = vor.u32 %v443, %v444
    %v447 = vrot.slane %v443, 4
    %v449 = vshrl.u32 %v362, 16
    %v451 = vrot.slane %v449, 7
    %v452 = vshll.u32 %v362, 16
    %v454 = vor.u32 %v451, %v452
    %v455 = vrot.slane %v451, 4
    %v457 = vshrl.u32 %v363, 16
    %v459 = vrot.slane %v457, 7
    %v460 = vshll.u32 %v363, 16
    %v462 = vor.u32 %v459, %v460
    %v463 = vrot.slane %v459, 4
    %v465 = vshrl.u32 %v364, 16
    %v467 = vrot.slane %v465, 7
    %v468 = vshll.u32 %v364, 16
    %v470 = vor.u32 %v467, %v468
    %v471 = vrot.slane %v467, 4
    %v473 = vshrl.u32 %v365, 16
    %v475 = vrot.slane %v473, 7
    %v476 = vshll.u32 %v365, 16
    %v478 = vor.u32 %v475, %v476
    %v479 = vrot.slane %v475, 4
    %v481 = vshrl.u32 %v366, 16
    %v483 = vrot.slane %v481, 7
    %v484 = vshll.u32 %v366, 16
    %v486 = vor.u32 %v483, %v484
    %v487 = vrot.slane %v483, 4
    %v489 = vshrl.u32 %v367, 16
    %v491 = vrot.slane %v489, 7
    %v492 = vshll.u32 %v367, 16
    %v494 = vor.u32 %v491, %v492
    %v495 = vrot.slane %v491, 4
    %vm528 = vcmask 1043456
    %vm529 = vmand %vm528, %vm302
    %v530 = vld [vmem:[%s250] sm:$0xf]
    %v531 = vsel %vm529, %v374, %v530
    %532 = vst [vmem:[%s250] sm:$0xf] %v531
    %v533 = vld [vmem:[%s250 + $0x4] sm:$0x1]
    %v534 = vsel %vm253, %v375, %v533
    %535 = vst [vmem:[%s250 + $0x4] sm:$0x1] %v534
    %v536 = vld [vmem:[%s250 + $0x8] sm:$0xf]
    %v537 = vsel %vm529, %v382, %v536
    %538 = vst [vmem:[%s250 + $0x8] sm:$0xf] %v537
    %v539 = vld [vmem:[%s250 + $0xc] sm:$0x1]
    %v540 = vsel %vm253, %v383, %v539
    %541 = vst [vmem:[%s250 + $0xc] sm:$0x1] %v540
    %v542 = vld [vmem:[%s250 + $0x10] sm:$0xf]
    %v543 = vsel %vm529, %v390, %v542
    %544 = vst [vmem:[%s250 + $0x10] sm:$0xf] %v543
    %v545 = vld [vmem:[%s250 + $0x14] sm:$0x1]
    %v546 = vsel %vm253, %v391, %v545
    %547 = vst [vmem:[%s250 + $0x14] sm:$0x1] %v546
    %v548 = vld [vmem:[%s250 + $0x18] sm:$0xf]
    %v549 = vsel %vm529, %v398, %v548
    %550 = vst [vmem:[%s250 + $0x18] sm:$0xf] %v549
    %v551 = vld [vmem:[%s250 + $0x1c] sm:$0x1]
    %v552 = vsel %vm253, %v399, %v551
    %553 = vst [vmem:[%s250 + $0x1c] sm:$0x1] %v552
    %v554 = vld [vmem:[%s250 + $0x20] sm:$0xf]
    %v555 = vsel %vm529, %v406, %v554
    %556 = vst [vmem:[%s250 + $0x20] sm:$0xf] %v555
    %v557 = vld [vmem:[%s250 + $0x24] sm:$0x1]
    %v558 = vsel %vm253, %v407, %v557
    %559 = vst [vmem:[%s250 + $0x24] sm:$0x1] %v558
    %v560 = vld [vmem:[%s250 + $0x28] sm:$0xf]
    %v561 = vsel %vm529, %v414, %v560
    %562 = vst [vmem:[%s250 + $0x28] sm:$0xf] %v561
    %v563 = vld [vmem:[%s250 + $0x2c] sm:$0x1]
    %v564 = vsel %vm253, %v415, %v563
    %565 = vst [vmem:[%s250 + $0x2c] sm:$0x1] %v564
    %v566 = vld [vmem:[%s250 + $0x30] sm:$0xf]
    %v567 = vsel %vm529, %v422, %v566
    %568 = vst [vmem:[%s250 + $0x30] sm:$0xf] %v567
    %v569 = vld [vmem:[%s250 + $0x34] sm:$0x1]
    %v570 = vsel %vm253, %v423, %v569
    %571 = vst [vmem:[%s250 + $0x34] sm:$0x1] %v570
    %v572 = vld [vmem:[%s250 + $0x38] sm:$0xf]
    %v573 = vsel %vm529, %v430, %v572
    %574 = vst [vmem:[%s250 + $0x38] sm:$0xf] %v573
    %v575 = vld [vmem:[%s250 + $0x3c] sm:$0x1]
    %v576 = vsel %vm253, %v431, %v575
    %577 = vst [vmem:[%s250 + $0x3c] sm:$0x1] %v576
    %v578 = vld [vmem:[%s250 + $0x50] sm:$0xf]
    %v579 = vsel %vm529, %v438, %v578
    %580 = vst [vmem:[%s250 + $0x50] sm:$0xf] %v579
    %v581 = vld [vmem:[%s250 + $0x54] sm:$0x1]
    %v582 = vsel %vm253, %v439, %v581
    %583 = vst [vmem:[%s250 + $0x54] sm:$0x1] %v582
    %v584 = vld [vmem:[%s250 + $0x58] sm:$0xf]
    %v585 = vsel %vm529, %v446, %v584
    %586 = vst [vmem:[%s250 + $0x58] sm:$0xf] %v585
    %v587 = vld [vmem:[%s250 + $0x5c] sm:$0x1]
    %v588 = vsel %vm253, %v447, %v587
    %589 = vst [vmem:[%s250 + $0x5c] sm:$0x1] %v588
    %v590 = vld [vmem:[%s250 + $0x60] sm:$0xf]
    %v591 = vsel %vm529, %v454, %v590
    %592 = vst [vmem:[%s250 + $0x60] sm:$0xf] %v591
    %v593 = vld [vmem:[%s250 + $0x64] sm:$0x1]
    %v594 = vsel %vm253, %v455, %v593
    %595 = vst [vmem:[%s250 + $0x64] sm:$0x1] %v594
    %v596 = vld [vmem:[%s250 + $0x68] sm:$0xf]
    %v597 = vsel %vm529, %v462, %v596
    %598 = vst [vmem:[%s250 + $0x68] sm:$0xf] %v597
    %v599 = vld [vmem:[%s250 + $0x6c] sm:$0x1]
    %v600 = vsel %vm253, %v463, %v599
    %601 = vst [vmem:[%s250 + $0x6c] sm:$0x1] %v600
    %v602 = vld [vmem:[%s250 + $0x70] sm:$0xf]
    %v603 = vsel %vm529, %v470, %v602
    %604 = vst [vmem:[%s250 + $0x70] sm:$0xf] %v603
    %v605 = vld [vmem:[%s250 + $0x74] sm:$0x1]
    %v606 = vsel %vm253, %v471, %v605
    %607 = vst [vmem:[%s250 + $0x74] sm:$0x1] %v606
    %v608 = vld [vmem:[%s250 + $0x78] sm:$0xf]
    %v609 = vsel %vm529, %v478, %v608
    %610 = vst [vmem:[%s250 + $0x78] sm:$0xf] %v609
    %v611 = vld [vmem:[%s250 + $0x7c] sm:$0x1]
    %v612 = vsel %vm253, %v479, %v611
    %613 = vst [vmem:[%s250 + $0x7c] sm:$0x1] %v612
    %v614 = vld [vmem:[%s250 + $0x80] sm:$0xf]
    %v615 = vsel %vm529, %v486, %v614
    %616 = vst [vmem:[%s250 + $0x80] sm:$0xf] %v615
    %v617 = vld [vmem:[%s250 + $0x84] sm:$0x1]
    %v618 = vsel %vm253, %v487, %v617
    %619 = vst [vmem:[%s250 + $0x84] sm:$0x1] %v618
    %v620 = vld [vmem:[%s250 + $0x88] sm:$0xf]
    %v621 = vsel %vm529, %v494, %v620
    %622 = vst [vmem:[%s250 + $0x88] sm:$0xf] %v621
    %v623 = vld [vmem:[%s250 + $0x8c] sm:$0x1]
    %v624 = vsel %vm253, %v495, %v623
    %625 = vst [vmem:[%s250 + $0x8c] sm:$0x1] %v624
    %v626 = vld [vmem:[#allocation2] sm:$0xf]
    %v627 = vld [vmem:[#allocation2 + $0x8] sm:$0xf]
    %v628 = vld [vmem:[#allocation2 + $0x10] sm:$0xf]
    %v629 = vld [vmem:[#allocation2 + $0x18] sm:$0xf]
    %v630 = vld [vmem:[#allocation2 + $0x20] sm:$0xf]
    %v631 = vld [vmem:[#allocation2 + $0x28] sm:$0xf]
    %v632 = vld [vmem:[#allocation2 + $0x30] sm:$0xf]
    %v633 = vld [vmem:[#allocation2 + $0x38] sm:$0xf]
    %v634 = vld [vmem:[#allocation2 + $0x40] sm:$0xf]
    %v635 = vld [vmem:[#allocation2 + $0x48] sm:$0xf]
    %v636 = vld [vmem:[#allocation2 + $0x50] sm:$0xf]
    %v637 = vld [vmem:[#allocation2 + $0x58] sm:$0xf]
    %v638 = vld [vmem:[#allocation2 + $0x60] sm:$0xf]
    %v639 = vld [vmem:[#allocation2 + $0x68] sm:$0xf]
    %v640 = vld [vmem:[#allocation2 + $0x70] sm:$0xf]
    %v641 = vld [vmem:[#allocation2 + $0x78] sm:$0xf]
    %v642 = vld [vmem:[#allocation2 + $0x80] sm:$0xf]
    %v643 = vld [vmem:[#allocation2 + $0x88] sm:$0xf]
    %v644 = vld [vmem:[#allocation2 + $0x90] sm:$0xf]
    %v645 = vld [vmem:[#allocation2 + $0x98] sm:$0xf]
    %v646 = vld [vmem:[#allocation3] sm:$0xf]
    %v647 = vld [vmem:[#allocation3 + $0x4] sm:$0xf]
    %v648 = vld [vmem:[#allocation3 + $0x8] sm:$0xf]
    %v649 = vld [vmem:[#allocation3 + $0xc] sm:$0xf]
    %v650 = vld [vmem:[#allocation3 + $0x10] sm:$0xf]
    %v651 = vld [vmem:[#allocation3 + $0x14] sm:$0xf]
    %v652 = vld [vmem:[#allocation3 + $0x18] sm:$0xf]
    %v653 = vld [vmem:[#allocation3 + $0x1c] sm:$0xf]
    %v654 = vld [vmem:[#allocation3 + $0x20] sm:$0xf]
    %v655 = vld [vmem:[#allocation3 + $0x24] sm:$0xf]
    %v656 = vld [vmem:[#allocation3 + $0x28] sm:$0xf]
    %v657 = vld [vmem:[#allocation3 + $0x2c] sm:$0xf]
    %v658 = vld [vmem:[#allocation3 + $0x30] sm:$0xf]
    %v659 = vld [vmem:[#allocation3 + $0x34] sm:$0xf]
    %v660 = vld [vmem:[#allocation3 + $0x38] sm:$0xf]
    %v661 = vld [vmem:[#allocation3 + $0x3c] sm:$0xf]
    %v662 = vld [vmem:[#allocation3 + $0x40] sm:$0xf]
    %v663 = vld [vmem:[#allocation3 + $0x44] sm:$0xf]
    %v664 = vld [vmem:[#allocation3 + $0x48] sm:$0xf]
    %v665 = vld [vmem:[#allocation3 + $0x4c] sm:$0xf]
    %v666 = vld [vmem:[#allocation3 + $0x50] sm:$0xf]
    %v667 = vld [vmem:[#allocation3 + $0x54] sm:$0xf]
    %v668 = vld [vmem:[#allocation3 + $0x58] sm:$0xf]
    %v669 = vld [vmem:[#allocation3 + $0x5c] sm:$0xf]
    %v670 = vld [vmem:[#allocation3 + $0x60] sm:$0xf]
    %v671 = vld [vmem:[#allocation3 + $0x64] sm:$0xf]
    %v672 = vld [vmem:[#allocation3 + $0x68] sm:$0xf]
    %v673 = vld [vmem:[#allocation3 + $0x6c] sm:$0xf]
    %v674 = vld [vmem:[#allocation3 + $0x70] sm:$0xf]
    %v675 = vld [vmem:[#allocation3 + $0x74] sm:$0xf]
    %v676 = vld [vmem:[#allocation3 + $0x78] sm:$0xf]
    %v677 = vld [vmem:[#allocation3 + $0x7c] sm:$0xf]
    %v678 = vld [vmem:[#allocation3 + $0x80] sm:$0xf]
    %v679 = vld [vmem:[#allocation3 + $0x84] sm:$0xf]
    %v680 = vld [vmem:[#allocation3 + $0x88] sm:$0xf]
    %v681 = vld [vmem:[#allocation3 + $0x8c] sm:$0xf]
    %v682 = vld [vmem:[#allocation3 + $0x90] sm:$0xf]
    %v683 = vld [vmem:[#allocation3 + $0x94] sm:$0xf]
    %v684 = vld [vmem:[#allocation3 + $0x98] sm:$0xf]
    %v685 = vld [vmem:[#allocation3 + $0x9c] sm:$0xf]
    %v686 = vld [vmem:[#allocation3 + $0xa0] sm:$0xf]
    %v687 = vld [vmem:[#allocation3 + $0xa4] sm:$0xf]
    %v688 = vld [vmem:[#allocation3 + $0xa8] sm:$0xf]
    %v689 = vld [vmem:[#allocation3 + $0xac] sm:$0xf]
    %v690 = vld [vmem:[#allocation3 + $0xb0] sm:$0xf]
    %v691 = vld [vmem:[#allocation3 + $0xb4] sm:$0xf]
    %v692 = vld [vmem:[#allocation3 + $0xb8] sm:$0xf]
    %v693 = vld [vmem:[#allocation3 + $0xbc] sm:$0xf]
    %v694 = vld [vmem:[#allocation2] sm:$0xf]
    %v695 = vld [vmem:[#allocation2 + $0x4] sm:$0x1]
    %v696 = vld [vmem:[#allocation2 + $0x8] sm:$0xf]
    %v697 = vld [vmem:[#allocation2 + $0xc] sm:$0x1]
    %v698 = vld [vmem:[#allocation2 + $0x10] sm:$0xf]
    %v699 = vld [vmem:[#allocation2 + $0x14] sm:$0x1]
    %v700 = vld [vmem:[#allocation2 + $0x18] sm:$0xf]
    %v701 = vld [vmem:[#allocation2 + $0x1c] sm:$0x1]
    %v702 = vld [vmem:[#allocation2 + $0x20] sm:$0xf]
    %v703 = vld [vmem:[#allocation2 + $0x24] sm:$0x1]
    %v704 = vld [vmem:[#allocation2 + $0x28] sm:$0xf]
    %v705 = vld [vmem:[#allocation2 + $0x2c] sm:$0x1]
    %v706 = vld [vmem:[#allocation2 + $0x30] sm:$0xf]
    %v707 = vld [vmem:[#allocation2 + $0x34] sm:$0x1]
    %v708 = vld [vmem:[#allocation2 + $0x38] sm:$0xf]
    %v709 = vld [vmem:[#allocation2 + $0x3c] sm:$0x1]
    %v710 = vld [vmem:[#allocation2 + $0x40] sm:$0xf]
    %v711 = vld [vmem:[#allocation2 + $0x44] sm:$0x1]
    %v712 = vld [vmem:[#allocation2 + $0x48] sm:$0xf]
    %v713 = vld [vmem:[#allocation2 + $0x4c] sm:$0x1]
    %v714 = vld [vmem:[#allocation2 + $0x50] sm:$0xf]
    %v715 = vld [vmem:[#allocation2 + $0x54] sm:$0x1]
    %v716 = vld [vmem:[#allocation2 + $0x58] sm:$0xf]
    %v717 = vld [vmem:[#allocation2 + $0x5c] sm:$0x1]
    %v718 = vld [vmem:[#allocation2 + $0x60] sm:$0xf]
    %v719 = vld [vmem:[#allocation2 + $0x64] sm:$0x1]
    %v720 = vld [vmem:[#allocation2 + $0x68] sm:$0xf]
    %v721 = vld [vmem:[#allocation2 + $0x6c] sm:$0x1]
    %v722 = vld [vmem:[#allocation2 + $0x70] sm:$0xf]
    %v723 = vld [vmem:[#allocation2 + $0x74] sm:$0x1]
    %v724 = vld [vmem:[#allocation2 + $0x78] sm:$0xf]
    %v725 = vld [vmem:[#allocation2 + $0x7c] sm:$0x1]
    %v726 = vld [vmem:[#allocation2 + $0x80] sm:$0xf]
    %v727 = vld [vmem:[#allocation2 + $0x84] sm:$0x1]
    %v728 = vld [vmem:[#allocation2 + $0x88] sm:$0xf]
    %v729 = vld [vmem:[#allocation2 + $0x8c] sm:$0x1]
    %v730 = vld [vmem:[#allocation2 + $0x90] sm:$0xf]
    %v731 = vld [vmem:[#allocation2 + $0x94] sm:$0x1]
    %v732 = vld [vmem:[#allocation2 + $0x98] sm:$0xf]
    %v733 = vld [vmem:[#allocation2 + $0x9c] sm:$0x1]
    %v766 = vunpack.c.l.b16 %v694
    %v767 = vunpack.c.l.b16 %v695
    %v768 = vunpack.c.l.b16 %v696
    %v769 = vunpack.c.l.b16 %v697
    %v770 = vunpack.c.l.b16 %v698
    %v771 = vunpack.c.l.b16 %v699
    %v772 = vunpack.c.l.b16 %v700
    %v773 = vunpack.c.l.b16 %v701
    %v774 = vunpack.c.l.b16 %v702
    %v775 = vunpack.c.l.b16 %v703
    %v776 = vunpack.c.l.b16 %v704
    %v777 = vunpack.c.l.b16 %v705
    %v778 = vunpack.c.l.b16 %v706
    %v779 = vunpack.c.l.b16 %v707
    %v780 = vunpack.c.l.b16 %v708
    %v781 = vunpack.c.l.b16 %v709
    %v782 = vunpack.c.l.b16 %v714
    %v783 = vunpack.c.l.b16 %v715
    %v784 = vunpack.c.l.b16 %v716
    %v785 = vunpack.c.l.b16 %v717
    %v786 = vunpack.c.l.b16 %v718
    %v787 = vunpack.c.l.b16 %v719
    %v788 = vunpack.c.l.b16 %v720
    %v789 = vunpack.c.l.b16 %v721
    %v790 = vunpack.c.l.b16 %v722
    %v791 = vunpack.c.l.b16 %v723
    %v792 = vunpack.c.l.b16 %v724
    %v793 = vunpack.c.l.b16 %v725
    %v794 = vunpack.c.l.b16 %v726
    %v795 = vunpack.c.l.b16 %v727
    %v796 = vunpack.c.l.b16 %v728
    %v797 = vunpack.c.l.b16 %v729
    %v802 = vunpack.c.l.b16 %v710
    %v803 = vunpack.c.l.b16 %v711
    %v804 = vunpack.c.l.b16 %v730
    %v805 = vunpack.c.l.b16 %v731
    %v810 = vunpack.c.l.b16 %v712
    %v811 = vunpack.c.l.b16 %v713
    %v812 = vunpack.c.l.b16 %v732
    %v813 = vunpack.c.l.b16 %v733
    %s814 = scalar_lea.vmem [#allocation3], 192
    %v815 = vld [vmem:[%s814] sm:$0xf]
    %v816 = vld [vmem:[%s814 + $0x4] sm:$0xf]
    %v817 = vld [vmem:[%s814 + $0x8] sm:$0xf]
    %v818 = vld [vmem:[%s814 + $0xc] sm:$0xf]
    %v819 = vld [vmem:[%s814 + $0x10] sm:$0xf]
    %v820 = vld [vmem:[%s814 + $0x14] sm:$0xf]
    %v821 = vld [vmem:[%s814 + $0x18] sm:$0xf]
    %v822 = vld [vmem:[%s814 + $0x1c] sm:$0xf]
    %v823 = vld [vmem:[%s814 + $0x20] sm:$0xf]
    %v824 = vld [vmem:[%s814 + $0x24] sm:$0xf]
    %v825 = vld [vmem:[%s814 + $0x28] sm:$0xf]
    %v826 = vld [vmem:[%s814 + $0x2c] sm:$0xf]
    %v827 = vld [vmem:[%s814 + $0x30] sm:$0xf]
    %v828 = vld [vmem:[%s814 + $0x34] sm:$0xf]
    %v829 = vld [vmem:[%s814 + $0x38] sm:$0xf]
    %v830 = vld [vmem:[%s814 + $0x3c] sm:$0xf]
    %v831 = vld [vmem:[%s814 + $0x40] sm:$0xf]
    %v832 = vld [vmem:[%s814 + $0x44] sm:$0xf]
    %v833 = vld [vmem:[%s814 + $0x48] sm:$0xf]
    %v834 = vld [vmem:[%s814 + $0x4c] sm:$0xf]
    %v835 = vld [vmem:[%s814 + $0x50] sm:$0xf]
    %v836 = vld [vmem:[%s814 + $0x54] sm:$0xf]
    %v837 = vld [vmem:[%s814 + $0x58] sm:$0xf]
    %v838 = vld [vmem:[%s814 + $0x5c] sm:$0xf]
    %v839 = vld [vmem:[%s814 + $0x60] sm:$0xf]
    %v840 = vld [vmem:[%s814 + $0x64] sm:$0xf]
    %v841 = vld [vmem:[%s814 + $0x68] sm:$0xf]
    %v842 = vld [vmem:[%s814 + $0x6c] sm:$0xf]
    %v843 = vld [vmem:[%s814 + $0x70] sm:$0xf]
    %v844 = vld [vmem:[%s814 + $0x74] sm:$0xf]
    %v845 = vld [vmem:[%s814 + $0x78] sm:$0xf]
    %v846 = vld [vmem:[%s814 + $0x7c] sm:$0xf]
    %v847 = vld [vmem:[%s814 + $0x80] sm:$0xf]
    %v848 = vld [vmem:[%s814 + $0x84] sm:$0xf]
    %v849 = vld [vmem:[%s814 + $0x88] sm:$0xf]
    %v850 = vld [vmem:[%s814 + $0x8c] sm:$0xf]
    %v851 = vld [vmem:[%s814 + $0x90] sm:$0xf]
    %v852 = vld [vmem:[%s814 + $0x94] sm:$0xf]
    %v853 = vld [vmem:[%s814 + $0x98] sm:$0xf]
    %v854 = vld [vmem:[%s814 + $0x9c] sm:$0xf]
    %v855 = vld [vmem:[%s814 + $0xa0] sm:$0xf]
    %v856 = vld [vmem:[%s814 + $0xa4] sm:$0xf]
    %v857 = vld [vmem:[%s814 + $0xa8] sm:$0xf]
    %v858 = vld [vmem:[%s814 + $0xac] sm:$0xf]
    %v859 = vld [vmem:[%s814 + $0xb0] sm:$0xf]
    %v860 = vld [vmem:[%s814 + $0xb4] sm:$0xf]
    %v861 = vld [vmem:[%s814 + $0xb8] sm:$0xf]
    %v862 = vld [vmem:[%s814 + $0xbc] sm:$0xf]
    %v863 = vpack.c.b16 %v768, %v766
    %v864 = vpack.c.b16 %v770, %v770
    %v865 = vpack.c.b16 %v769, %v767
    %v866 = vpack.c.b16 %v771, %v771
    %v867 = vpack.c.b16 %v770, %v768
    %v868 = vpack.c.b16 %v772, %v772
    %v869 = vpack.c.b16 %v771, %v769
    %v870 = vpack.c.b16 %v773, %v773
    %v871 = vpack.c.b16 %v772, %v770
    %v872 = vpack.c.b16 %v774, %v774
    %v873 = vpack.c.b16 %v773, %v771
    %v874 = vpack.c.b16 %v775, %v775
    %v875 = vpack.c.b16 %v774, %v772
    %v876 = vpack.c.b16 %v776, %v776
    %v877 = vpack.c.b16 %v775, %v773
    %v878 = vpack.c.b16 %v777, %v777
    %v879 = vpack.c.b16 %v776, %v774
    %v880 = vpack.c.b16 %v778, %v778
    %v881 = vpack.c.b16 %v777, %v775
    %v882 = vpack.c.b16 %v779, %v779
    %v883 = vpack.c.b16 %v778, %v776
    %v884 = vpack.c.b16 %v780, %v780
    %v885 = vpack.c.b16 %v779, %v777
    %v886 = vpack.c.b16 %v781, %v781
    %v887 = vpack.c.b16 %v780, %v778
    %v888 = vpack.c.b16 %v802, %v802
    %v889 = vpack.c.b16 %v781, %v779
    %v890 = vpack.c.b16 %v803, %v803
    %v891 = vpack.c.b16 %v802, %v780
    %v892 = vpack.c.b16 %v810, %v810
    %v893 = vpack.c.b16 %v803, %v781
    %v894 = vpack.c.b16 %v811, %v811
    %v895 = vpack.c.b16 %v784, %v782
    %v896 = vpack.c.b16 %v786, %v786
    %v897 = vpack.c.b16 %v785, %v783
    %v898 = vpack.c.b16 %v787, %v787
    %v899 = vpack.c.b16 %v786, %v784
    %v900 = vpack.c.b16 %v788, %v788
    %v901 = vpack.c.b16 %v787, %v785
    %v902 = vpack.c.b16 %v789, %v789
    %v903 = vpack.c.b16 %v788, %v786
    %v904 = vpack.c.b16 %v790, %v790
    %v905 = vpack.c.b16 %v789, %v787
    %v906 = vpack.c.b16 %v791, %v791
    %v907 = vpack.c.b16 %v790, %v788
    %v908 = vpack.c.b16 %v792, %v792
    %v909 = vpack.c.b16 %v791, %v789
    %v910 = vpack.c.b16 %v793, %v793
    %v911 = vpack.c.b16 %v792, %v790
    %v912 = vpack.c.b16 %v794, %v794
    %v913 = vpack.c.b16 %v793, %v791
    %v914 = vpack.c.b16 %v795, %v795
    %v915 = vpack.c.b16 %v794, %v792
    %v916 = vpack.c.b16 %v796, %v796
    %v917 = vpack.c.b16 %v795, %v793
    %v918 = vpack.c.b16 %v797, %v797
    %v919 = vpack.c.b16 %v796, %v794
    %v920 = vpack.c.b16 %v804, %v804
    %v921 = vpack.c.b16 %v797, %v795
    %v922 = vpack.c.b16 %v805, %v805
    %v923 = vpack.c.b16 %v804, %v796
    %v924 = vpack.c.b16 %v812, %v812
    %v925 = vpack.c.b16 %v805, %v797
    %v926 = vpack.c.b16 %v813, %v813
    %vm927 = vsmask.f32 3328
    %vm928 = vsmask.f32 7440
    %vm929 = vmor %vm927, %vm928
    %v931 = vshrl.u32 %v863, 16
    %v933 = vrot.slane %v931, 4
    %v934 = vshll.u32 %v863, 16
    %v936 = vrot.slane %v934, 5
    %v937 = vor.u32 %v933, %v936
    %v938 = vrot.slane %v937, 4
    %v940 = vshll.u32 %v865, 16
    %v942 = vrot.slane %v940, 5
    %v943 = vsel %vm929, %v938, %v942
    %v945 = vshrl.u32 %v864, 16
    %v947 = vrot.slane %v945, 4
    %v948 = vshll.u32 %v864, 16
    %v950 = vrot.slane %v948, 5
    %v951 = vor.u32 %v947, %v950
    %v952 = vrot.slane %v951, 4
    %v954 = vshll.u32 %v866, 16
    %v956 = vrot.slane %v954, 5
    %v957 = vsel %vm929, %v952, %v956
    %v959 = vshrl.u32 %v867, 16
    %v961 = vrot.slane %v959, 4
    %v962 = vshll.u32 %v867, 16
    %v964 = vrot.slane %v962, 5
    %v965 = vor.u32 %v961, %v964
    %v966 = vrot.slane %v965, 4
    %v968 = vshll.u32 %v869, 16
    %v970 = vrot.slane %v968, 5
    %v971 = vsel %vm929, %v966, %v970
    %v973 = vshrl.u32 %v868, 16
    %v975 = vrot.slane %v973, 4
    %v976 = vshll.u32 %v868, 16
    %v978 = vrot.slane %v976, 5
    %v979 = vor.u32 %v975, %v978
    %v980 = vrot.slane %v979, 4
    %v982 = vshll.u32 %v870, 16
    %v984 = vrot.slane %v982, 5
    %v985 = vsel %vm929, %v980, %v984
    %v987 = vshrl.u32 %v871, 16
    %v989 = vrot.slane %v987, 4
    %v990 = vshll.u32 %v871, 16
    %v992 = vrot.slane %v990, 5
    %v993 = vor.u32 %v989, %v992
    %v994 = vrot.slane %v993, 4
    %v996 = vshll.u32 %v873, 16
    %v998 = vrot.slane %v996, 5
    %v999 = vsel %vm929, %v994, %v998
    %v1001 = vshrl.u32 %v872, 16
    %v1003 = vrot.slane %v1001, 4
    %v1004 = vshll.u32 %v872, 16
    %v1006 = vrot.slane %v1004, 5
    %v1007 = vor.u32 %v1003, %v1006
    %v1008 = vrot.slane %v1007, 4
    %v1010 = vshll.u32 %v874, 16
    %v1012 = vrot.slane %v1010, 5
    %v1013 = vsel %vm929, %v1008, %v1012
    %v1015 = vshrl.u32 %v875, 16
    %v1017 = vrot.slane %v1015, 4
    %v1018 = vshll.u32 %v875, 16
    %v1020 = vrot.slane %v1018, 5
    %v1021 = vor.u32 %v1017, %v1020
    %v1022 = vrot.slane %v1021, 4
    %v1024 = vshll.u32 %v877, 16
    %v1026 = vrot.slane %v1024, 5
    %v1027 = vsel %vm929, %v1022, %v1026
    %v1029 = vshrl.u32 %v876, 16
    %v1031 = vrot.slane %v1029, 4
    %v1032 = vshll.u32 %v876, 16
    %v1034 = vrot.slane %v1032, 5
    %v1035 = vor.u32 %v1031, %v1034
    %v1036 = vrot.slane %v1035, 4
    %v1038 = vshll.u32 %v878, 16
    %v1040 = vrot.slane %v1038, 5
    %v1041 = vsel %vm929, %v1036, %v1040
    %v1043 = vshrl.u32 %v879, 16
    %v1045 = vrot.slane %v1043, 4
    %v1046 = vshll.u32 %v879, 16
    %v1048 = vrot.slane %v1046, 5
    %v1049 = vor.u32 %v1045, %v1048
    %v1050 = vrot.slane %v1049, 4
    %v1052 = vshll.u32 %v881, 16
    %v1054 = vrot.slane %v1052, 5
    %v1055 = vsel %vm929, %v1050, %v1054
    %v1057 = vshrl.u32 %v880, 16
    %v1059 = vrot.slane %v1057, 4
    %v1060 = vshll.u32 %v880, 16
    %v1062 = vrot.slane %v1060, 5
    %v1063 = vor.u32 %v1059, %v1062
    %v1064 = vrot.slane %v1063, 4
    %v1066 = vshll.u32 %v882, 16
    %v1068 = vrot.slane %v1066, 5
    %v1069 = vsel %vm929, %v1064, %v1068
    %v1071 = vshrl.u32 %v883, 16
    %v1073 = vrot.slane %v1071, 4
    %v1074 = vshll.u32 %v883, 16
    %v1076 = vrot.slane %v1074, 5
    %v1077 = vor.u32 %v1073, %v1076
    %v1078 = vrot.slane %v1077, 4
    %v1080 = vshll.u32 %v885, 16
    %v1082 = vrot.slane %v1080, 5
    %v1083 = vsel %vm929, %v1078, %v1082
    %v1085 = vshrl.u32 %v884, 16
    %v1087 = vrot.slane %v1085, 4
    %v1088 = vshll.u32 %v884, 16
    %v1090 = vrot.slane %v1088, 5
    %v1091 = vor.u32 %v1087, %v1090
    %v1092 = vrot.slane %v1091, 4
    %v1094 = vshll.u32 %v886, 16
    %v1096 = vrot.slane %v1094, 5
    %v1097 = vsel %vm929, %v1092, %v1096
    %v1099 = vshrl.u32 %v887, 16
    %v1101 = vrot.slane %v1099, 4
    %v1102 = vshll.u32 %v887, 16
    %v1104 = vrot.slane %v1102, 5
    %v1105 = vor.u32 %v1101, %v1104
    %v1106 = vrot.slane %v1105, 4
    %v1108 = vshll.u32 %v889, 16
    %v1110 = vrot.slane %v1108, 5
    %v1111 = vsel %vm929, %v1106, %v1110
    %v1113 = vshrl.u32 %v888, 16
    %v1115 = vrot.slane %v1113, 4
    %v1116 = vshll.u32 %v888, 16
    %v1118 = vrot.slane %v1116, 5
    %v1119 = vor.u32 %v1115, %v1118
    %v1120 = vrot.slane %v1119, 4
    %v1122 = vshll.u32 %v890, 16
    %v1124 = vrot.slane %v1122, 5
    %v1125 = vsel %vm929, %v1120, %v1124
    %v1127 = vshrl.u32 %v891, 16
    %v1129 = vrot.slane %v1127, 4
    %v1130 = vshll.u32 %v891, 16
    %v1132 = vrot.slane %v1130, 5
    %v1133 = vor.u32 %v1129, %v1132
    %v1134 = vrot.slane %v1133, 4
    %v1136 = vshll.u32 %v893, 16
    %v1138 = vrot.slane %v1136, 5
    %v1139 = vsel %vm929, %v1134, %v1138
    %v1141 = vshrl.u32 %v892, 16
    %v1143 = vrot.slane %v1141, 4
    %v1144 = vshll.u32 %v892, 16
    %v1146 = vrot.slane %v1144, 5
    %v1147 = vor.u32 %v1143, %v1146
    %v1148 = vrot.slane %v1147, 4
    %v1150 = vshll.u32 %v894, 16
    %v1152 = vrot.slane %v1150, 5
    %v1153 = vsel %vm929, %v1148, %v1152
    %v1155 = vshrl.u32 %v895, 16
    %v1157 = vrot.slane %v1155, 4
    %v1158 = vshll.u32 %v895, 16
    %v1160 = vrot.slane %v1158, 5
    %v1161 = vor.u32 %v1157, %v1160
    %v1162 = vrot.slane %v1161, 4
    %v1164 = vshll.u32 %v897, 16
    %v1166 = vrot.slane %v1164, 5
    %v1167 = vsel %vm929, %v1162, %v1166
    %v1169 = vshrl.u32 %v896, 16
    %v1171 = vrot.slane %v1169, 4
    %v1172 = vshll.u32 %v896, 16
    %v1174 = vrot.slane %v1172, 5
    %v1175 = vor.u32 %v1171, %v1174
    %v1176 = vrot.slane %v1175, 4
    %v1178 = vshll.u32 %v898, 16
    %v1180 = vrot.slane %v1178, 5
    %v1181 = vsel %vm929, %v1176, %v1180
    %v1183 = vshrl.u32 %v899, 16
    %v1185 = vrot.slane %v1183, 4
    %v1186 = vshll.u32 %v899, 16
    %v1188 = vrot.slane %v1186, 5
    %v1189 = vor.u32 %v1185, %v1188
    %v1190 = vrot.slane %v1189, 4
    %v1192 = vshll.u32 %v901, 16
    %v1194 = vrot.slane %v1192, 5
    %v1195 = vsel %vm929, %v1190, %v1194
    %v1197 = vshrl.u32 %v900, 16
    %v1199 = vrot.slane %v1197, 4
    %v1200 = vshll.u32 %v900, 16
    %v1202 = vrot.slane %v1200, 5
    %v1203 = vor.u32 %v1199, %v1202
    %v1204 = vrot.slane %v1203, 4
    %v1206 = vshll.u32 %v902, 16
    %v1208 = vrot.slane %v1206, 5
    %v1209 = vsel %vm929, %v1204, %v1208
    %v1211 = vshrl.u32 %v903, 16
    %v1213 = vrot.slane %v1211, 4
    %v1214 = vshll.u32 %v903, 16
    %v1216 = vrot.slane %v1214, 5
    %v1217 = vor.u32 %v1213, %v1216
    %v1218 = vrot.slane %v1217, 4
    %v1220 = vshll.u32 %v905, 16
    %v1222 = vrot.slane %v1220, 5
    %v1223 = vsel %vm929, %v1218, %v1222
    %v1225 = vshrl.u32 %v904, 16
    %v1227 = vrot.slane %v1225, 4
    %v1228 = vshll.u32 %v904, 16
    %v1230 = vrot.slane %v1228, 5
    %v1231 = vor.u32 %v1227, %v1230
    %v1232 = vrot.slane %v1231, 4
    %v1234 = vshll.u32 %v906, 16
    %v1236 = vrot.slane %v1234, 5
    %v1237 = vsel %vm929, %v1232, %v1236
    %v1239 = vshrl.u32 %v907, 16
    %v1241 = vrot.slane %v1239, 4
    %v1242 = vshll.u32 %v907, 16
    %v1244 = vrot.slane %v1242, 5
    %v1245 = vor.u32 %v1241, %v1244
    %v1246 = vrot.slane %v1245, 4
    %v1248 = vshll.u32 %v909, 16
    %v1250 = vrot.slane %v1248, 5
    %v1251 = vsel %vm929, %v1246, %v1250
    %v1253 = vshrl.u32 %v908, 16
    %v1255 = vrot.slane %v1253, 4
    %v1256 = vshll.u32 %v908, 16
    %v1258 = vrot.slane %v1256, 5
    %v1259 = vor.u32 %v1255, %v1258
    %v1260 = vrot.slane %v1259, 4
    %v1262 = vshll.u32 %v910, 16
    %v1264 = vrot.slane %v1262, 5
    %v1265 = vsel %vm929, %v1260, %v1264
    %v1267 = vshrl.u32 %v911, 16
    %v1269 = vrot.slane %v1267, 4
    %v1270 = vshll.u32 %v911, 16
    %v1272 = vrot.slane %v1270, 5
    %v1273 = vor.u32 %v1269, %v1272
    %v1274 = vrot.slane %v1273, 4
    %v1276 = vshll.u32 %v913, 16
    %v1278 = vrot.slane %v1276, 5
    %v1279 = vsel %vm929, %v1274, %v1278
    %v1281 = vshrl.u32 %v912, 16
    %v1283 = vrot.slane %v1281, 4
    %v1284 = vshll.u32 %v912, 16
    %v1286 = vrot.slane %v1284, 5
    %v1287 = vor.u32 %v1283, %v1286
    %v1288 = vrot.slane %v1287, 4
    %v1290 = vshll.u32 %v914, 16
    %v1292 = vrot.slane %v1290, 5
    %v1293 = vsel %vm929, %v1288, %v1292
    %v1295 = vshrl.u32 %v915, 16
    %v1297 = vrot.slane %v1295, 4
    %v1298 = vshll.u32 %v915, 16
    %v1300 = vrot.slane %v1298, 5
    %v1301 = vor.u32 %v1297, %v1300
    %v1302 = vrot.slane %v1301, 4
    %v1304 = vshll.u32 %v917, 16
    %v1306 = vrot.slane %v1304, 5
    %v1307 = vsel %vm929, %v1302, %v1306
    %v1309 = vshrl.u32 %v916, 16
    %v1311 = vrot.slane %v1309, 4
    %v1312 = vshll.u32 %v916, 16
    %v1314 = vrot.slane %v1312, 5
    %v1315 = vor.u32 %v1311, %v1314
    %v1316 = vrot.slane %v1315, 4
    %v1318 = vshll.u32 %v918, 16
    %v1320 = vrot.slane %v1318, 5
    %v1321 = vsel %vm929, %v1316, %v1320
    %v1323 = vshrl.u32 %v919, 16
    %v1325 = vrot.slane %v1323, 4
    %v1326 = vshll.u32 %v919, 16
    %v1328 = vrot.slane %v1326, 5
    %v1329 = vor.u32 %v1325, %v1328
    %v1330 = vrot.slane %v1329, 4
    %v1332 = vshll.u32 %v921, 16
    %v1334 = vrot.slane %v1332, 5
    %v1335 = vsel %vm929, %v1330, %v1334
    %v1337 = vshrl.u32 %v920, 16
    %v1339 = vrot.slane %v1337, 4
    %v1340 = vshll.u32 %v920, 16
    %v1342 = vrot.slane %v1340, 5
    %v1343 = vor.u32 %v1339, %v1342
    %v1344 = vrot.slane %v1343, 4
    %v1346 = vshll.u32 %v922, 16
    %v1348 = vrot.slane %v1346, 5
    %v1349 = vsel %vm929, %v1344, %v1348
    %v1351 = vshrl.u32 %v923, 16
    %v1353 = vrot.slane %v1351, 4
    %v1354 = vshll.u32 %v923, 16
    %v1356 = vrot.slane %v1354, 5
    %v1357 = vor.u32 %v1353, %v1356
    %v1358 = vrot.slane %v1357, 4
    %v1360 = vshll.u32 %v925, 16
    %v1362 = vrot.slane %v1360, 5
    %v1363 = vsel %vm929, %v1358, %v1362
    %v1365 = vshrl.u32 %v924, 16
    %v1367 = vrot.slane %v1365, 4
    %v1368 = vshll.u32 %v924, 16
    %v1370 = vrot.slane %v1368, 5
    %v1371 = vor.u32 %v1367, %v1370
    %v1372 = vrot.slane %v1371, 4
    %v1374 = vshll.u32 %v926, 16
    %v1376 = vrot.slane %v1374, 5
    %v1377 = vsel %vm929, %v1372, %v1376
    %v1378 = vunpack.c.l.b16 %v943
    %v1379 = vunpack.c.h.b16 %v943
    %v1380 = vunpack.c.l.b16 %v957
    %v1381 = vunpack.c.l.b16 %v971
    %v1382 = vunpack.c.h.b16 %v971
    %v1383 = vunpack.c.l.b16 %v985
    %v1384 = vunpack.c.l.b16 %v999
    %v1385 = vunpack.c.h.b16 %v999
    %v1386 = vunpack.c.l.b16 %v1013
    %v1387 = vunpack.c.l.b16 %v1027
    %v1388 = vunpack.c.h.b16 %v1027
    %v1389 = vunpack.c.l.b16 %v1041
    %v1390 = vunpack.c.l.b16 %v1055
    %v1391 = vunpack.c.h.b16 %v1055
    %v1392 = vunpack.c.l.b16 %v1069
    %v1393 = vunpack.c.l.b16 %v1083
    %v1394 = vunpack.c.h.b16 %v1083
    %v1395 = vunpack.c.l.b16 %v1097
    %v1396 = vunpack.c.l.b16 %v1111
    %v1397 = vunpack.c.h.b16 %v1111
    %v1398 = vunpack.c.l.b16 %v1125
    %v1399 = vunpack.c.l.b16 %v1139
    %v1400 = vunpack.c.h.b16 %v1139
    %v1401 = vunpack.c.l.b16 %v1153
    %v1402 = vunpack.c.l.b16 %v1167
    %v1403 = vunpack.c.h.b16 %v1167
    %v1404 = vunpack.c.l.b16 %v1181
    %v1405 = vunpack.c.l.b16 %v1195
    %v1406 = vunpack.c.h.b16 %v1195
    %v1407 = vunpack.c.l.b16 %v1209
    %v1408 = vunpack.c.l.b16 %v1223
    %v1409 = vunpack.c.h.b16 %v1223
    %v1410 = vunpack.c.l.b16 %v1237
    %v1411 = vunpack.c.l.b16 %v1251
    %v1412 = vunpack.c.h.b16 %v1251
    %v1413 = vunpack.c.l.b16 %v1265
    %v1414 = vunpack.c.l.b16 %v1279
    %v1415 = vunpack.c.h.b16 %v1279
    %v1416 = vunpack.c.l.b16 %v1293
    %v1417 = vunpack.c.l.b16 %v1307
    %v1418 = vunpack.c.h.b16 %v1307
    %v1419 = vunpack.c.l.b16 %v1321
    %v1420 = vunpack.c.l.b16 %v1335
    %v1421 = vunpack.c.h.b16 %v1335
    %v1422 = vunpack.c.l.b16 %v1349
    %v1423 = vunpack.c.l.b16 %v1363
    %v1424 = vunpack.c.h.b16 %v1363
    %v1425 = vunpack.c.l.b16 %v1377
    %v1426 = vpack.c.b16 %v1381, %v1378
    %v1427 = vpack.c.b16 %v1382, %v1379
    %v1428 = vpack.c.b16 %v1383, %v1380
    %v1429 = vpack.c.b16 %v1387, %v1384
    %v1430 = vpack.c.b16 %v1388, %v1385
    %v1431 = vpack.c.b16 %v1389, %v1386
    %v1432 = vpack.c.b16 %v1393, %v1390
    %v1433 = vpack.c.b16 %v1394, %v1391
    %v1434 = vpack.c.b16 %v1395, %v1392
    %v1435 = vpack.c.b16 %v1399, %v1396
    %v1436 = vpack.c.b16 %v1400, %v1397
    %v1437 = vpack.c.b16 %v1401, %v1398
    %v1438 = vpack.c.b16 %v1405, %v1402
    %v1439 = vpack.c.b16 %v1406, %v1403
    %v1440 = vpack.c.b16 %v1407, %v1404
    %v1441 = vpack.c.b16 %v1411, %v1408
    %v1442 = vpack.c.b16 %v1412, %v1409
    %v1443 = vpack.c.b16 %v1413, %v1410
    %v1444 = vpack.c.b16 %v1417, %v1414
    %v1445 = vpack.c.b16 %v1418, %v1415
    %v1446 = vpack.c.b16 %v1419, %v1416
    %v1447 = vpack.c.b16 %v1423, %v1420
    %v1448 = vpack.c.b16 %v1424, %v1421
    %v1449 = vpack.c.b16 %v1425, %v1422
    %v1522 = vunpack.c.l.b16 %v815
    %v1523 = vunpack.c.l.b16 %v816
    %v1524 = vunpack.c.l.b16 %v817
    %v1525 = vunpack.c.l.b16 %v818
    %v1526 = vunpack.c.l.b16 %v819
    %v1527 = vunpack.c.l.b16 %v820
    %v1528 = vunpack.c.l.b16 %v821
    %v1529 = vunpack.c.l.b16 %v822
    %v1530 = vunpack.c.l.b16 %v823
    %v1531 = vunpack.c.l.b16 %v824
    %v1532 = vunpack.c.l.b16 %v825
    %v1533 = vunpack.c.l.b16 %v826
    %v1534 = vunpack.c.l.b16 %v827
    %v1535 = vunpack.c.l.b16 %v828
    %v1536 = vunpack.c.l.b16 %v829
    %v1537 = vunpack.c.l.b16 %v830
    %v1538 = vunpack.c.l.b16 %v831
    %v1539 = vunpack.c.l.b16 %v832
    %v1540 = vunpack.c.l.b16 %v833
    %v1541 = vunpack.c.l.b16 %v834
    %v1542 = vunpack.c.l.b16 %v835
    %v1543 = vunpack.c.l.b16 %v836
    %v1544 = vunpack.c.l.b16 %v837
    %v1545 = vunpack.c.l.b16 %v838
    %v1546 = vunpack.c.l.b16 %v839
    %v1547 = vunpack.c.l.b16 %v840
    %v1548 = vunpack.c.l.b16 %v841
    %v1549 = vunpack.c.l.b16 %v842
    %v1550 = vunpack.c.l.b16 %v843
    %v1551 = vunpack.c.l.b16 %v844
    %v1552 = vunpack.c.l.b16 %v845
    %v1553 = vunpack.c.l.b16 %v846
    %v1554 = vunpack.c.l.b16 %v847
    %v1555 = vunpack.c.l.b16 %v848
    %v1556 = vunpack.c.l.b16 %v849
    %v1557 = vunpack.c.l.b16 %v850
    %v1558 = vunpack.c.l.b16 %v851
    %v1559 = vunpack.c.l.b16 %v852
    %v1560 = vunpack.c.l.b16 %v853
    %v1561 = vunpack.c.l.b16 %v854
    %v1562 = vunpack.c.l.b16 %v855
    %v1563 = vunpack.c.l.b16 %v856
    %v1564 = vunpack.c.l.b16 %v857
    %v1565 = vunpack.c.l.b16 %v858
    %v1566 = vunpack.c.l.b16 %v859
    %v1567 = vunpack.c.l.b16 %v860
    %v1568 = vunpack.c.l.b16 %v861
    %v1569 = vunpack.c.l.b16 %v862
    %v1570 = vpack.c.b16 %v1523, %v1522
    %v1571 = vpack.c.b16 %v1525, %v1524
    %v1572 = vpack.c.b16 %v1527, %v1526
    %v1573 = vpack.c.b16 %v1529, %v1528
    %v1574 = vpack.c.b16 %v1531, %v1530
    %v1575 = vpack.c.b16 %v1533, %v1532
    %v1576 = vpack.c.b16 %v1535, %v1534
    %v1577 = vpack.c.b16 %v1537, %v1536
    %v1578 = vpack.c.b16 %v1539, %v1538
    %v1579 = vpack.c.b16 %v1541, %v1540
    %v1580 = vpack.c.b16 %v1543, %v1542
    %v1581 = vpack.c.b16 %v1545, %v1544
    %v1582 = vpack.c.b16 %v1547, %v1546
    %v1583 = vpack.c.b16 %v1549, %v1548
    %v1584 = vpack.c.b16 %v1551, %v1550
    %v1585 = vpack.c.b16 %v1553, %v1552
    %v1586 = vpack.c.b16 %v1555, %v1554
    %v1587 = vpack.c.b16 %v1557, %v1556
    %v1588 = vpack.c.b16 %v1559, %v1558
    %v1589 = vpack.c.b16 %v1561, %v1560
    %v1590 = vpack.c.b16 %v1563, %v1562
    %v1591 = vpack.c.b16 %v1565, %v1564
    %v1592 = vpack.c.b16 %v1567, %v1566
    %v1593 = vpack.c.b16 %v1569, %v1568
    %1618 = vmatpush.bf16.msra.mxu0 %v1577
    %1619 = vmatpush.bf16.msra.mxu0 %v1576
    %1620 = vmatpush.bf16.msra.mxu0 %v1575
    %1621 = vmatpush.bf16.msra.mxu0 %v1574
    %1622 = vmatpush.bf16.msra.mxu0 %v1573
    %1623 = vmatpush.bf16.msra.mxu0 %v1572
    %1624 = vmatpush.bf16.msra.mxu0 %v1571
    %1625 = vmatpush.bf16.msra.mxu0 %v1570
    %1626 = vmatmul.bf16.gmra.mxu0 %v1426
    %v1627 = vpop.f32.mrf.mxu0
    %v1628 = vadd.f32 0.0, %v1627
    %v1629 = vpop.f32.mrf.mxu0
    %v1630 = vadd.f32 0.0, %v1629
    %1631 = vmatmul.bf16.gmra.mxu0 %v1429
    %v1632 = vpop.f32.mrf.mxu0
    %v1633 = vadd.f32 0.0, %v1632
    %v1634 = vpop.f32.mrf.mxu0
    %v1635 = vadd.f32 0.0, %v1634
    %1636 = vmatmul.bf16.gmra.mxu0 %v1432
    %v1637 = vpop.f32.mrf.mxu0
    %v1638 = vadd.f32 0.0, %v1637
    %v1639 = vpop.f32.mrf.mxu0
    %v1640 = vadd.f32 0.0, %v1639
    %1641 = vmatmul.bf16.gmra.mxu0 %v1435
    %v1642 = vpop.f32.mrf.mxu0
    %v1643 = vadd.f32 0.0, %v1642
    %v1644 = vpop.f32.mrf.mxu0
    %v1645 = vadd.f32 0.0, %v1644
    %1646 = vmatmul.bf16.gmra.mxu0 %v1438
    %v1647 = vpop.f32.mrf.mxu0
    %v1648 = vadd.f32 0.0, %v1647
    %v1649 = vpop.f32.mrf.mxu0
    %v1650 = vadd.f32 0.0, %v1649
    %1651 = vmatmul.bf16.gmra.mxu0 %v1441
    %v1652 = vpop.f32.mrf.mxu0
    %v1653 = vadd.f32 0.0, %v1652
    %v1654 = vpop.f32.mrf.mxu0
    %v1655 = vadd.f32 0.0, %v1654
    %1656 = vmatmul.bf16.gmra.mxu0 %v1444
    %v1657 = vpop.f32.mrf.mxu0
    %v1658 = vadd.f32 0.0, %v1657
    %v1659 = vpop.f32.mrf.mxu0
    %v1660 = vadd.f32 0.0, %v1659
    %1661 = vmatmul.bf16.gmra.mxu0 %v1447
    %v1662 = vpop.f32.mrf.mxu0
    %v1663 = vadd.f32 0.0, %v1662
    %v1664 = vpop.f32.mrf.mxu0
    %v1665 = vadd.f32 0.0, %v1664
    %1666 = vdwg.mxu0
    %1667 = vmatpush.bf16.msra.mxu0 %v1585
    %1668 = vmatpush.bf16.msra.mxu0 %v1584
    %1669 = vmatpush.bf16.msra.mxu0 %v1583
    %1670 = vmatpush.bf16.msra.mxu0 %v1582
    %1671 = vmatpush.bf16.msra.mxu0 %v1581
    %1672 = vmatpush.bf16.msra.mxu0 %v1580
    %1673 = vmatpush.bf16.msra.mxu0 %v1579
    %1674 = vmatpush.bf16.msra.mxu0 %v1578
    %1675 = vmatmul.bf16.gmra.mxu0 %v1427
    %v1676 = vpop.f32.mrf.mxu0
    %v1677 = vadd.f32 %v1628, %v1676
    %v1678 = vpop.f32.mrf.mxu0
    %v1679 = vadd.f32 %v1630, %v1678
    %1680 = vmatmul.bf16.gmra.mxu0 %v1430
    %v1681 = vpop.f32.mrf.mxu0
    %v1682 = vadd.f32 %v1633, %v1681
    %v1683 = vpop.f32.mrf.mxu0
    %v1684 = vadd.f32 %v1635, %v1683
    %1685 = vmatmul.bf16.gmra.mxu0 %v1433
    %v1686 = vpop.f32.mrf.mxu0
    %v1687 = vadd.f32 %v1638, %v1686
    %v1688 = vpop.f32.mrf.mxu0
    %v1689 = vadd.f32 %v1640, %v1688
    %1690 = vmatmul.bf16.gmra.mxu0 %v1436
    %v1691 = vpop.f32.mrf.mxu0
    %v1692 = vadd.f32 %v1643, %v1691
    %v1693 = vpop.f32.mrf.mxu0
    %v1694 = vadd.f32 %v1645, %v1693
    %1695 = vmatmul.bf16.gmra.mxu0 %v1439
    %v1696 = vpop.f32.mrf.mxu0
    %v1697 = vadd.f32 %v1648, %v1696
    %v1698 = vpop.f32.mrf.mxu0
    %v1699 = vadd.f32 %v1650, %v1698
    %1700 = vmatmul.bf16.gmra.mxu0 %v1442
    %v1701 = vpop.f32.mrf.mxu0
    %v1702 = vadd.f32 %v1653, %v1701
    %v1703 = vpop.f32.mrf.mxu0
    %v1704 = vadd.f32 %v1655, %v1703
    %1705 = vmatmul.bf16.gmra.mxu0 %v1445
    %v1706 = vpop.f32.mrf.mxu0
    %v1707 = vadd.f32 %v1658, %v1706
    %v1708 = vpop.f32.mrf.mxu0
    %v1709 = vadd.f32 %v1660, %v1708
    %1710 = vmatmul.bf16.gmra.mxu0 %v1448
    %v1711 = vpop.f32.mrf.mxu0
    %v1712 = vadd.f32 %v1663, %v1711
    %v1713 = vpop.f32.mrf.mxu0
    %v1714 = vadd.f32 %v1665, %v1713
    %1715 = vdwg.mxu0
    %1716 = vmatpush.bf16.msra.mxu0 %v1593
    %1717 = vmatpush.bf16.msra.mxu0 %v1592
    %1718 = vmatpush.bf16.msra.mxu0 %v1591
    %1719 = vmatpush.bf16.msra.mxu0 %v1590
    %1720 = vmatpush.bf16.msra.mxu0 %v1589
    %1721 = vmatpush.bf16.msra.mxu0 %v1588
    %1722 = vmatpush.bf16.msra.mxu0 %v1587
    %1723 = vmatpush.bf16.msra.mxu0 %v1586
    %1724 = vmatmul.bf16.gmra.mxu0 %v1428
    %v1725 = vpop.f32.mrf.mxu0
    %v1726 = vadd.f32 %v1677, %v1725
    %v1727 = vpop.f32.mrf.mxu0
    %v1728 = vadd.f32 %v1679, %v1727
    %1729 = vmatmul.bf16.gmra.mxu0 %v1431
    %v1730 = vpop.f32.mrf.mxu0
    %v1731 = vadd.f32 %v1682, %v1730
    %v1732 = vpop.f32.mrf.mxu0
    %v1733 = vadd.f32 %v1684, %v1732
    %1734 = vmatmul.bf16.gmra.mxu0 %v1434
    %v1735 = vpop.f32.mrf.mxu0
    %v1736 = vadd.f32 %v1687, %v1735
    %v1737 = vpop.f32.mrf.mxu0
    %v1738 = vadd.f32 %v1689, %v1737
    %1739 = vmatmul.bf16.gmra.mxu0 %v1437
    %v1740 = vpop.f32.mrf.mxu0
    %v1741 = vadd.f32 %v1692, %v1740
    %v1742 = vpop.f32.mrf.mxu0
    %v1743 = vadd.f32 %v1694, %v1742
    %1744 = vmatmul.bf16.gmra.mxu0 %v1440
    %v1745 = vpop.f32.mrf.mxu0
    %v1746 = vadd.f32 %v1697, %v1745
    %v1747 = vpop.f32.mrf.mxu0
    %v1748 = vadd.f32 %v1699, %v1747
    %1749 = vmatmul.bf16.gmra.mxu0 %v1443
    %v1750 = vpop.f32.mrf.mxu0
    %v1751 = vadd.f32 %v1702, %v1750
    %v1752 = vpop.f32.mrf.mxu0
    %v1753 = vadd.f32 %v1704, %v1752
    %1754 = vmatmul.bf16.gmra.mxu0 %v1446
    %v1755 = vpop.f32.mrf.mxu0
    %v1756 = vadd.f32 %v1707, %v1755
    %v1757 = vpop.f32.mrf.mxu0
    %v1758 = vadd.f32 %v1709, %v1757
    %1759 = vmatmul.bf16.gmra.mxu0 %v1449
    %v1760 = vpop.f32.mrf.mxu0
    %v1761 = vadd.f32 %v1712, %v1760
    %v1762 = vpop.f32.mrf.mxu0
    %v1763 = vadd.f32 %v1714, %v1762
    %1764 = vdwg.mxu0
    %v1785 = vunpack.c.l.b16 %v626
    %v1786 = vunpack.c.l.b16 %v627
    %v1787 = vunpack.c.l.b16 %v628
    %v1788 = vunpack.c.l.b16 %v629
    %v1789 = vunpack.c.l.b16 %v630
    %v1790 = vunpack.c.l.b16 %v631
    %v1791 = vunpack.c.l.b16 %v632
    %v1792 = vunpack.c.l.b16 %v633
    %v1793 = vunpack.c.l.b16 %v634
    %v1794 = vunpack.c.l.b16 %v635
    %v1795 = vunpack.c.l.b16 %v636
    %v1796 = vunpack.c.l.b16 %v637
    %v1797 = vunpack.c.l.b16 %v638
    %v1798 = vunpack.c.l.b16 %v639
    %v1799 = vunpack.c.l.b16 %v640
    %v1800 = vunpack.c.l.b16 %v641
    %v1801 = vunpack.c.l.b16 %v642
    %v1802 = vunpack.c.l.b16 %v643
    %v1803 = vunpack.c.l.b16 %v644
    %v1804 = vunpack.c.l.b16 %v645
    %v1805 = vpack.c.b16 %v1786, %v1785
    %v1806 = vpack.c.b16 %v1787, %v1786
    %v1807 = vpack.c.b16 %v1788, %v1787
    %v1808 = vpack.c.b16 %v1789, %v1788
    %v1809 = vpack.c.b16 %v1790, %v1789
    %v1810 = vpack.c.b16 %v1791, %v1790
    %v1811 = vpack.c.b16 %v1792, %v1791
    %v1812 = vpack.c.b16 %v1793, %v1792
    %v1813 = vpack.c.b16 %v1794, %v1793
    %v1814 = vpack.c.b16 %v1796, %v1795
    %v1815 = vpack.c.b16 %v1797, %v1796
    %v1816 = vpack.c.b16 %v1798, %v1797
    %v1817 = vpack.c.b16 %v1799, %v1798
    %v1818 = vpack.c.b16 %v1800, %v1799
    %v1819 = vpack.c.b16 %v1801, %v1800
    %v1820 = vpack.c.b16 %v1802, %v1801
    %v1821 = vpack.c.b16 %v1803, %v1802
    %v1822 = vpack.c.b16 %v1804, %v1803
    %v1889 = vunpack.c.l.b16 %v646
    %v1890 = vunpack.c.l.b16 %v647
    %v1891 = vunpack.c.l.b16 %v648
    %v1892 = vunpack.c.l.b16 %v649
    %v1893 = vunpack.c.l.b16 %v650
    %v1894 = vunpack.c.l.b16 %v651
    %v1895 = vunpack.c.l.b16 %v652
    %v1896 = vunpack.c.l.b16 %v653
    %v1897 = vunpack.c.l.b16 %v654
    %v1898 = vunpack.c.l.b16 %v655
    %v1899 = vunpack.c.l.b16 %v656
    %v1900 = vunpack.c.l.b16 %v657
    %v1901 = vunpack.c.l.b16 %v658
    %v1902 = vunpack.c.l.b16 %v659
    %v1903 = vunpack.c.l.b16 %v660
    %v1904 = vunpack.c.l.b16 %v661
    %v1905 = vunpack.c.l.b16 %v662
    %v1906 = vunpack.c.l.b16 %v663
    %v1907 = vunpack.c.l.b16 %v664
    %v1908 = vunpack.c.l.b16 %v665
    %v1909 = vunpack.c.l.b16 %v666
    %v1910 = vunpack.c.l.b16 %v667
    %v1911 = vunpack.c.l.b16 %v668
    %v1912 = vunpack.c.l.b16 %v669
    %v1913 = vunpack.c.l.b16 %v670
    %v1914 = vunpack.c.l.b16 %v671
    %v1915 = vunpack.c.l.b16 %v672
    %v1916 = vunpack.c.l.b16 %v673
    %v1917 = vunpack.c.l.b16 %v674
    %v1918 = vunpack.c.l.b16 %v675
    %v1919 = vunpack.c.l.b16 %v676
    %v1920 = vunpack.c.l.b16 %v677
    %v1921 = vunpack.c.l.b16 %v678
    %v1922 = vunpack.c.l.b16 %v679
    %v1923 = vunpack.c.l.b16 %v680
    %v1924 = vunpack.c.l.b16 %v681
    %v1925 = vunpack.c.l.b16 %v682
    %v1926 = vunpack.c.l.b16 %v683
    %v1927 = vunpack.c.l.b16 %v684
    %v1928 = vunpack.c.l.b16 %v685
    %v1929 = vunpack.c.l.b16 %v686
    %v1930 = vunpack.c.l.b16 %v687
    %v1931 = vunpack.c.l.b16 %v688
    %v1932 = vunpack.c.l.b16 %v689
    %v1933 = vunpack.c.l.b16 %v690
    %v1934 = vunpack.c.l.b16 %v691
    %v1935 = vunpack.c.l.b16 %v692
    %v1936 = vunpack.c.l.b16 %v693
    %v1937 = vpack.c.b16 %v1890, %v1889
    %v1938 = vpack.c.b16 %v1892, %v1891
    %v1939 = vpack.c.b16 %v1894, %v1893
    %v1940 = vpack.c.b16 %v1896, %v1895
    %v1941 = vpack.c.b16 %v1898, %v1897
    %v1942 = vpack.c.b16 %v1900, %v1899
    %v1943 = vpack.c.b16 %v1902, %v1901
    %v1944 = vpack.c.b16 %v1904, %v1903
    %v1945 = vpack.c.b16 %v1906, %v1905
    %v1946 = vpack.c.b16 %v1908, %v1907
    %v1947 = vpack.c.b16 %v1910, %v1909
    %v1948 = vpack.c.b16 %v1912, %v1911
    %v1949 = vpack.c.b16 %v1914, %v1913
    %v1950 = vpack.c.b16 %v1916, %v1915
    %v1951 = vpack.c.b16 %v1918, %v1917
    %v1952 = vpack.c.b16 %v1920, %v1919
    %v1953 = vpack.c.b16 %v1922, %v1921
    %v1954 = vpack.c.b16 %v1924, %v1923
    %v1955 = vpack.c.b16 %v1926, %v1925
    %v1956 = vpack.c.b16 %v1928, %v1927
    %v1957 = vpack.c.b16 %v1930, %v1929
    %v1958 = vpack.c.b16 %v1932, %v1931
    %v1959 = vpack.c.b16 %v1934, %v1933
    %v1960 = vpack.c.b16 %v1936, %v1935
    %1985 = vmatpush.bf16.msra.mxu0 %v1944
    %1986 = vmatpush.bf16.msra.mxu0 %v1943
    %1987 = vmatpush.bf16.msra.mxu0 %v1942
    %1988 = vmatpush.bf16.msra.mxu0 %v1941
    %1989 = vmatpush.bf16.msra.mxu0 %v1940
    %1990 = vmatpush.bf16.msra.mxu0 %v1939
    %1991 = vmatpush.bf16.msra.mxu0 %v1938
    %1992 = vmatpush.bf16.msra.mxu0 %v1937
    %1993 = vmatmul.bf16.gmra.mxu0 %v1805
    %v1994 = vpop.f32.mrf.mxu0
    %v1995 = vadd.f32 %v1726, %v1994
    %v1996 = vpop.f32.mrf.mxu0
    %v1997 = vadd.f32 %v1728, %v1996
    %1998 = vmatmul.bf16.gmra.mxu0 %v1807
    %v1999 = vpop.f32.mrf.mxu0
    %v2000 = vadd.f32 %v1731, %v1999
    %v2001 = vpop.f32.mrf.mxu0
    %v2002 = vadd.f32 %v1733, %v2001
    %2003 = vmatmul.bf16.gmra.mxu0 %v1809
    %v2004 = vpop.f32.mrf.mxu0
    %v2005 = vadd.f32 %v1736, %v2004
    %v2006 = vpop.f32.mrf.mxu0
    %v2007 = vadd.f32 %v1738, %v2006
    %2008 = vmatmul.bf16.gmra.mxu0 %v1811
    %v2009 = vpop.f32.mrf.mxu0
    %v2010 = vadd.f32 %v1741, %v2009
    %v2011 = vpop.f32.mrf.mxu0
    %v2012 = vadd.f32 %v1743, %v2011
    %2013 = vmatmul.bf16.gmra.mxu0 %v1814
    %v2014 = vpop.f32.mrf.mxu0
    %v2015 = vadd.f32 %v1746, %v2014
    %v2016 = vpop.f32.mrf.mxu0
    %v2017 = vadd.f32 %v1748, %v2016
    %2018 = vmatmul.bf16.gmra.mxu0 %v1816
    %v2019 = vpop.f32.mrf.mxu0
    %v2020 = vadd.f32 %v1751, %v2019
    %v2021 = vpop.f32.mrf.mxu0
    %v2022 = vadd.f32 %v1753, %v2021
    %2023 = vmatmul.bf16.gmra.mxu0 %v1818
    %v2024 = vpop.f32.mrf.mxu0
    %v2025 = vadd.f32 %v1756, %v2024
    %v2026 = vpop.f32.mrf.mxu0
    %v2027 = vadd.f32 %v1758, %v2026
    %2028 = vmatmul.bf16.gmra.mxu0 %v1820
    %v2029 = vpop.f32.mrf.mxu0
    %v2030 = vadd.f32 %v1761, %v2029
    %v2031 = vpop.f32.mrf.mxu0
    %v2032 = vadd.f32 %v1763, %v2031
    %2033 = vdwg.mxu0
    %2034 = vmatpush.bf16.msra.mxu0 %v1952
    %2035 = vmatpush.bf16.msra.mxu0 %v1951
    %2036 = vmatpush.bf16.msra.mxu0 %v1950
    %2037 = vmatpush.bf16.msra.mxu0 %v1949
    %2038 = vmatpush.bf16.msra.mxu0 %v1948
    %2039 = vmatpush.bf16.msra.mxu0 %v1947
    %2040 = vmatpush.bf16.msra.mxu0 %v1946
    %2041 = vmatpush.bf16.msra.mxu0 %v1945
    %2042 = vmatmul.bf16.gmra.mxu0 %v1806
    %v2043 = vpop.f32.mrf.mxu0
    %v2044 = vadd.f32 %v1995, %v2043
    %v2045 = vpop.f32.mrf.mxu0
    %v2046 = vadd.f32 %v1997, %v2045
    %2047 = vmatmul.bf16.gmra.mxu0 %v1808
    %v2048 = vpop.f32.mrf.mxu0
    %v2049 = vadd.f32 %v2000, %v2048
    %v2050 = vpop.f32.mrf.mxu0
    %v2051 = vadd.f32 %v2002, %v2050
    %2052 = vmatmul.bf16.gmra.mxu0 %v1810
    %v2053 = vpop.f32.mrf.mxu0
    %v2054 = vadd.f32 %v2005, %v2053
    %v2055 = vpop.f32.mrf.mxu0
    %v2056 = vadd.f32 %v2007, %v2055
    %2057 = vmatmul.bf16.gmra.mxu0 %v1812
    %v2058 = vpop.f32.mrf.mxu0
    %v2059 = vadd.f32 %v2010, %v2058
    %v2060 = vpop.f32.mrf.mxu0
    %v2061 = vadd.f32 %v2012, %v2060
    %2062 = vmatmul.bf16.gmra.mxu0 %v1815
    %v2063 = vpop.f32.mrf.mxu0
    %v2064 = vadd.f32 %v2015, %v2063
    %v2065 = vpop.f32.mrf.mxu0
    %v2066 = vadd.f32 %v2017, %v2065
    %2067 = vmatmul.bf16.gmra.mxu0 %v1817
    %v2068 = vpop.f32.mrf.mxu0
    %v2069 = vadd.f32 %v2020, %v2068
    %v2070 = vpop.f32.mrf.mxu0
    %v2071 = vadd.f32 %v2022, %v2070
    %2072 = vmatmul.bf16.gmra.mxu0 %v1819
    %v2073 = vpop.f32.mrf.mxu0
    %v2074 = vadd.f32 %v2025, %v2073
    %v2075 = vpop.f32.mrf.mxu0
    %v2076 = vadd.f32 %v2027, %v2075
    %2077 = vmatmul.bf16.gmra.mxu0 %v1821
    %v2078 = vpop.f32.mrf.mxu0
    %v2079 = vadd.f32 %v2030, %v2078
    %v2080 = vpop.f32.mrf.mxu0
    %v2081 = vadd.f32 %v2032, %v2080
    %2082 = vdwg.mxu0
    %2083 = vmatpush.bf16.msra.mxu0 %v1960
    %2084 = vmatpush.bf16.msra.mxu0 %v1959
    %2085 = vmatpush.bf16.msra.mxu0 %v1958
    %2086 = vmatpush.bf16.msra.mxu0 %v1957
    %2087 = vmatpush.bf16.msra.mxu0 %v1956
    %2088 = vmatpush.bf16.msra.mxu0 %v1955
    %2089 = vmatpush.bf16.msra.mxu0 %v1954
    %2090 = vmatpush.bf16.msra.mxu0 %v1953
    %2091 = vmatmul.bf16.gmra.mxu0 %v1807
    %v2092 = vpop.f32.mrf.mxu0
    %v2093 = vadd.f32 %v2044, %v2092
    %v2094 = vpop.f32.mrf.mxu0
    %v2095 = vadd.f32 %v2046, %v2094
    %2096 = vmatmul.bf16.gmra.mxu0 %v1809
    %v2097 = vpop.f32.mrf.mxu0
    %v2098 = vadd.f32 %v2049, %v2097
    %v2099 = vpop.f32.mrf.mxu0
    %v2100 = vadd.f32 %v2051, %v2099
    %2101 = vmatmul.bf16.gmra.mxu0 %v1811
    %v2102 = vpop.f32.mrf.mxu0
    %v2103 = vadd.f32 %v2054, %v2102
    %v2104 = vpop.f32.mrf.mxu0
    %v2105 = vadd.f32 %v2056, %v2104
    %2106 = vmatmul.bf16.gmra.mxu0 %v1813
    %v2107 = vpop.f32.mrf.mxu0
    %v2108 = vadd.f32 %v2059, %v2107
    %v2109 = vpop.f32.mrf.mxu0
    %v2110 = vadd.f32 %v2061, %v2109
    %2111 = vmatmul.bf16.gmra.mxu0 %v1816
    %v2112 = vpop.f32.mrf.mxu0
    %v2113 = vadd.f32 %v2064, %v2112
    %v2114 = vpop.f32.mrf.mxu0
    %v2115 = vadd.f32 %v2066, %v2114
    %2116 = vmatmul.bf16.gmra.mxu0 %v1818
    %v2117 = vpop.f32.mrf.mxu0
    %v2118 = vadd.f32 %v2069, %v2117
    %v2119 = vpop.f32.mrf.mxu0
    %v2120 = vadd.f32 %v2071, %v2119
    %2121 = vmatmul.bf16.gmra.mxu0 %v1820
    %v2122 = vpop.f32.mrf.mxu0
    %v2123 = vadd.f32 %v2074, %v2122
    %v2124 = vpop.f32.mrf.mxu0
    %v2125 = vadd.f32 %v2076, %v2124
    %2126 = vmatmul.bf16.gmra.mxu0 %v1822
    %v2127 = vpop.f32.mrf.mxu0
    %v2128 = vadd.f32 %v2079, %v2127
    %v2129 = vpop.f32.mrf.mxu0
    %v2130 = vadd.f32 %v2081, %v2129
    %2131 = vdwg.mxu0
    %v2132 = vld [vmem:[#allocation2] sm:$0xe]
    %v2133 = vld [vmem:[#allocation2 + $0x4] sm:$0x1]
    %v2134 = vld [vmem:[#allocation2 + $0x8] sm:$0xe]
    %v2135 = vld [vmem:[#allocation2 + $0xc] sm:$0x1]
    %v2136 = vld [vmem:[#allocation2 + $0x10] sm:$0xe]
    %v2137 = vld [vmem:[#allocation2 + $0x14] sm:$0x1]
    %v2138 = vld [vmem:[#allocation2 + $0x18] sm:$0xe]
    %v2139 = vld [vmem:[#allocation2 + $0x1c] sm:$0x1]
    %v2140 = vld [vmem:[#allocation2 + $0x20] sm:$0xe]
    %v2141 = vld [vmem:[#allocation2 + $0x24] sm:$0x1]
    %v2142 = vld [vmem:[#allocation2 + $0x28] sm:$0xe]
    %v2143 = vld [vmem:[#allocation2 + $0x2c] sm:$0x1]
    %v2144 = vld [vmem:[#allocation2 + $0x30] sm:$0xe]
    %v2145 = vld [vmem:[#allocation2 + $0x34] sm:$0x1]
    %v2146 = vld [vmem:[#allocation2 + $0x38] sm:$0xe]
    %v2147 = vld [vmem:[#allocation2 + $0x3c] sm:$0x1]
    %v2148 = vld [vmem:[#allocation2 + $0x40] sm:$0xe]
    %v2149 = vld [vmem:[#allocation2 + $0x44] sm:$0x1]
    %v2150 = vld [vmem:[#allocation2 + $0x48] sm:$0xe]
    %v2151 = vld [vmem:[#allocation2 + $0x4c] sm:$0x1]
    %v2152 = vld [vmem:[#allocation2 + $0x50] sm:$0xe]
    %v2153 = vld [vmem:[#allocation2 + $0x54] sm:$0x1]
    %v2154 = vld [vmem:[#allocation2 + $0x58] sm:$0xe]
    %v2155 = vld [vmem:[#allocation2 + $0x5c] sm:$0x1]
    %v2156 = vld [vmem:[#allocation2 + $0x60] sm:$0xe]
    %v2157 = vld [vmem:[#allocation2 + $0x64] sm:$0x1]
    %v2158 = vld [vmem:[#allocation2 + $0x68] sm:$0xe]
    %v2159 = vld [vmem:[#allocation2 + $0x6c] sm:$0x1]
    %v2160 = vld [vmem:[#allocation2 + $0x70] sm:$0xe]
    %v2161 = vld [vmem:[#allocation2 + $0x74] sm:$0x1]
    %v2162 = vld [vmem:[#allocation2 + $0x78] sm:$0xe]
    %v2163 = vld [vmem:[#allocation2 + $0x7c] sm:$0x1]
    %v2164 = vld [vmem:[#allocation2 + $0x80] sm:$0xe]
    %v2165 = vld [vmem:[#allocation2 + $0x84] sm:$0x1]
    %v2166 = vld [vmem:[#allocation2 + $0x88] sm:$0xe]
    %v2167 = vld [vmem:[#allocation2 + $0x8c] sm:$0x1]
    %v2168 = vld [vmem:[#allocation2 + $0x90] sm:$0xe]
    %v2169 = vld [vmem:[#allocation2 + $0x94] sm:$0x1]
    %v2170 = vld [vmem:[#allocation2 + $0x98] sm:$0xe]
    %v2171 = vld [vmem:[#allocation2 + $0x9c] sm:$0x1]
    %v2204 = vunpack.c.l.b16 %v2132
    %v2205 = vunpack.c.l.b16 %v2133
    %v2206 = vunpack.c.l.b16 %v2134
    %v2207 = vunpack.c.l.b16 %v2135
    %v2208 = vunpack.c.l.b16 %v2136
    %v2209 = vunpack.c.l.b16 %v2137
    %v2210 = vunpack.c.l.b16 %v2138
    %v2211 = vunpack.c.l.b16 %v2139
    %v2212 = vunpack.c.l.b16 %v2140
    %v2213 = vunpack.c.l.b16 %v2141
    %v2214 = vunpack.c.l.b16 %v2142
    %v2215 = vunpack.c.l.b16 %v2143
    %v2216 = vunpack.c.l.b16 %v2144
    %v2217 = vunpack.c.l.b16 %v2145
    %v2218 = vunpack.c.l.b16 %v2146
    %v2219 = vunpack.c.l.b16 %v2147
    %v2220 = vunpack.c.l.b16 %v2152
    %v2221 = vunpack.c.l.b16 %v2153
    %v2222 = vunpack.c.l.b16 %v2154
    %v2223 = vunpack.c.l.b16 %v2155
    %v2224 = vunpack.c.l.b16 %v2156
    %v2225 = vunpack.c.l.b16 %v2157
    %v2226 = vunpack.c.l.b16 %v2158
    %v2227 = vunpack.c.l.b16 %v2159
    %v2228 = vunpack.c.l.b16 %v2160
    %v2229 = vunpack.c.l.b16 %v2161
    %v2230 = vunpack.c.l.b16 %v2162
    %v2231 = vunpack.c.l.b16 %v2163
    %v2232 = vunpack.c.l.b16 %v2164
    %v2233 = vunpack.c.l.b16 %v2165
    %v2234 = vunpack.c.l.b16 %v2166
    %v2235 = vunpack.c.l.b16 %v2167
    %v2240 = vunpack.c.l.b16 %v2148
    %v2241 = vunpack.c.l.b16 %v2149
    %v2242 = vunpack.c.l.b16 %v2168
    %v2243 = vunpack.c.l.b16 %v2169
    %v2248 = vunpack.c.l.b16 %v2150
    %v2249 = vunpack.c.l.b16 %v2151
    %v2250 = vunpack.c.l.b16 %v2170
    %v2251 = vunpack.c.l.b16 %v2171
    %s2252 = scalar_lea.vmem [#allocation3], 384
    %v2253 = vld [vmem:[%s2252] sm:$0xf]
    %v2254 = vld [vmem:[%s2252 + $0x4] sm:$0xf]
    %v2255 = vld [vmem:[%s2252 + $0x8] sm:$0xf]
    %v2256 = vld [vmem:[%s2252 + $0xc] sm:$0xf]
    %v2257 = vld [vmem:[%s2252 + $0x10] sm:$0xf]
    %v2258 = vld [vmem:[%s2252 + $0x14] sm:$0xf]
    %v2259 = vld [vmem:[%s2252 + $0x18] sm:$0xf]
    %v2260 = vld [vmem:[%s2252 + $0x1c] sm:$0xf]
    %v2261 = vld [vmem:[%s2252 + $0x20] sm:$0xf]
    %v2262 = vld [vmem:[%s2252 + $0x24] sm:$0xf]
    %v2263 = vld [vmem:[%s2252 + $0x28] sm:$0xf]
    %v2264 = vld [vmem:[%s2252 + $0x2c] sm:$0xf]
    %v2265 = vld [vmem:[%s2252 + $0x30] sm:$0xf]
    %v2266 = vld [vmem:[%s2252 + $0x34] sm:$0xf]
    %v2267 = vld [vmem:[%s2252 + $0x38] sm:$0xf]
    %v2268 = vld [vmem:[%s2252 + $0x3c] sm:$0xf]
    %v2269 = vld [vmem:[%s2252 + $0x40] sm:$0xf]
    %v2270 = vld [vmem:[%s2252 + $0x44] sm:$0xf]
    %v2271 = vld [vmem:[%s2252 + $0x48] sm:$0xf]
    %v2272 = vld [vmem:[%s2252 + $0x4c] sm:$0xf]
    %v2273 = vld [vmem:[%s2252 + $0x50] sm:$0xf]
    %v2274 = vld [vmem:[%s2252 + $0x54] sm:$0xf]
    %v2275 = vld [vmem:[%s2252 + $0x58] sm:$0xf]
    %v2276 = vld [vmem:[%s2252 + $0x5c] sm:$0xf]
    %v2277 = vld [vmem:[%s2252 + $0x60] sm:$0xf]
    %v2278 = vld [vmem:[%s2252 + $0x64] sm:$0xf]
    %v2279 = vld [vmem:[%s2252 + $0x68] sm:$0xf]
    %v2280 = vld [vmem:[%s2252 + $0x6c] sm:$0xf]
    %v2281 = vld [vmem:[%s2252 + $0x70] sm:$0xf]
    %v2282 = vld [vmem:[%s2252 + $0x74] sm:$0xf]
    %v2283 = vld [vmem:[%s2252 + $0x78] sm:$0xf]
    %v2284 = vld [vmem:[%s2252 + $0x7c] sm:$0xf]
    %v2285 = vld [vmem:[%s2252 + $0x80] sm:$0xf]
    %v2286 = vld [vmem:[%s2252 + $0x84] sm:$0xf]
    %v2287 = vld [vmem:[%s2252 + $0x88] sm:$0xf]
    %v2288 = vld [vmem:[%s2252 + $0x8c] sm:$0xf]
    %v2289 = vld [vmem:[%s2252 + $0x90] sm:$0xf]
    %v2290 = vld [vmem:[%s2252 + $0x94] sm:$0xf]
    %v2291 = vld [vmem:[%s2252 + $0x98] sm:$0xf]
    %v2292 = vld [vmem:[%s2252 + $0x9c] sm:$0xf]
    %v2293 = vld [vmem:[%s2252 + $0xa0] sm:$0xf]
    %v2294 = vld [vmem:[%s2252 + $0xa4] sm:$0xf]
    %v2295 = vld [vmem:[%s2252 + $0xa8] sm:$0xf]
    %v2296 = vld [vmem:[%s2252 + $0xac] sm:$0xf]
    %v2297 = vld [vmem:[%s2252 + $0xb0] sm:$0xf]
    %v2298 = vld [vmem:[%s2252 + $0xb4] sm:$0xf]
    %v2299 = vld [vmem:[%s2252 + $0xb8] sm:$0xf]
    %v2300 = vld [vmem:[%s2252 + $0xbc] sm:$0xf]
    %v2301 = vpack.c.b16 %v2206, %v2204
    %v2302 = vpack.c.b16 %v2208, %v2208
    %v2303 = vpack.c.b16 %v2207, %v2205
    %v2304 = vpack.c.b16 %v2209, %v2209
    %v2305 = vpack.c.b16 %v2208, %v2206
    %v2306 = vpack.c.b16 %v2210, %v2210
    %v2307 = vpack.c.b16 %v2209, %v2207
    %v2308 = vpack.c.b16 %v2211, %v2211
    %v2309 = vpack.c.b16 %v2210, %v2208
    %v2310 = vpack.c.b16 %v2212, %v2212
    %v2311 = vpack.c.b16 %v2211, %v2209
    %v2312 = vpack.c.b16 %v2213, %v2213
    %v2313 = vpack.c.b16 %v2212, %v2210
    %v2314 = vpack.c.b16 %v2214, %v2214
    %v2315 = vpack.c.b16 %v2213, %v2211
    %v2316 = vpack.c.b16 %v2215, %v2215
    %v2317 = vpack.c.b16 %v2214, %v2212
    %v2318 = vpack.c.b16 %v2216, %v2216
    %v2319 = vpack.c.b16 %v2215, %v2213
    %v2320 = vpack.c.b16 %v2217, %v2217
    %v2321 = vpack.c.b16 %v2216, %v2214
    %v2322 = vpack.c.b16 %v2218, %v2218
    %v2323 = vpack.c.b16 %v2217, %v2215
    %v2324 = vpack.c.b16 %v2219, %v2219
    %v2325 = vpack.c.b16 %v2218, %v2216
    %v2326 = vpack.c.b16 %v2240, %v2240
    %v2327 = vpack.c.b16 %v2219, %v2217
    %v2328 = vpack.c.b16 %v2241, %v2241
    %v2329 = vpack.c.b16 %v2240, %v2218
    %v2330 = vpack.c.b16 %v2248, %v2248
    %v2331 = vpack.c.b16 %v2241, %v2219
    %v2332 = vpack.c.b16 %v2249, %v2249
    %v2333 = vpack.c.b16 %v2222, %v2220
    %v2334 = vpack.c.b16 %v2224, %v2224
    %v2335 = vpack.c.b16 %v2223, %v2221
    %v2336 = vpack.c.b16 %v2225, %v2225
    %v2337 = vpack.c.b16 %v2224, %v2222
    %v2338 = vpack.c.b16 %v2226, %v2226
    %v2339 = vpack.c.b16 %v2225, %v2223
    %v2340 = vpack.c.b16 %v2227, %v2227
    %v2341 = vpack.c.b16 %v2226, %v2224
    %v2342 = vpack.c.b16 %v2228, %v2228
    %v2343 = vpack.c.b16 %v2227, %v2225
    %v2344 = vpack.c.b16 %v2229, %v2229
    %v2345 = vpack.c.b16 %v2228, %v2226
    %v2346 = vpack.c.b16 %v2230, %v2230
    %v2347 = vpack.c.b16 %v2229, %v2227
    %v2348 = vpack.c.b16 %v2231, %v2231
    %v2349 = vpack.c.b16 %v2230, %v2228
    %v2350 = vpack.c.b16 %v2232, %v2232
    %v2351 = vpack.c.b16 %v2231, %v2229
    %v2352 = vpack.c.b16 %v2233, %v2233
    %v2353 = vpack.c.b16 %v2232, %v2230
    %v2354 = vpack.c.b16 %v2234, %v2234
    %v2355 = vpack.c.b16 %v2233, %v2231
    %v2356 = vpack.c.b16 %v2235, %v2235
    %v2357 = vpack.c.b16 %v2234, %v2232
    %v2358 = vpack.c.b16 %v2242, %v2242
    %v2359 = vpack.c.b16 %v2235, %v2233
    %v2360 = vpack.c.b16 %v2243, %v2243
    %v2361 = vpack.c.b16 %v2242, %v2234
    %v2362 = vpack.c.b16 %v2250, %v2250
    %v2363 = vpack.c.b16 %v2243, %v2235
    %v2364 = vpack.c.b16 %v2251, %v2251
    %vm2365 = vcmask 1042432
    %vm2366 = vcmask 1046532
    %vm2367 = vmor %vm2365, %vm2366
    %v2368 = vrot.slane %v2301, 5
    %v2369 = vrot.slane %v2368, 4
    %v2370 = vrot.slane %v2303, 5
    %v2371 = vsel %vm2367, %v2369, %v2370
    %v2372 = vrot.slane %v2302, 5
    %v2373 = vrot.slane %v2372, 4
    %v2374 = vrot.slane %v2304, 5
    %v2375 = vsel %vm2367, %v2373, %v2374
    %v2376 = vrot.slane %v2305, 5
    %v2377 = vrot.slane %v2376, 4
    %v2378 = vrot.slane %v2307, 5
    %v2379 = vsel %vm2367, %v2377, %v2378
    %v2380 = vrot.slane %v2306, 5
    %v2381 = vrot.slane %v2380, 4
    %v2382 = vrot.slane %v2308, 5
    %v2383 = vsel %vm2367, %v2381, %v2382
    %v2384 = vrot.slane %v2309, 5
    %v2385 = vrot.slane %v2384, 4
    %v2386 = vrot.slane %v2311, 5
    %v2387 = vsel %vm2367, %v2385, %v2386
    %v2388 = vrot.slane %v2310, 5
    %v2389 = vrot.slane %v2388, 4
    %v2390 = vrot.slane %v2312, 5
    %v2391 = vsel %vm2367, %v2389, %v2390
    %v2392 = vrot.slane %v2313, 5
    %v2393 = vrot.slane %v2392, 4
    %v2394 = vrot.slane %v2315, 5
    %v2395 = vsel %vm2367, %v2393, %v2394
    %v2396 = vrot.slane %v2314, 5
    %v2397 = vrot.slane %v2396, 4
    %v2398 = vrot.slane %v2316, 5
    %v2399 = vsel %vm2367, %v2397, %v2398
    %v2400 = vrot.slane %v2317, 5
    %v2401 = vrot.slane %v2400, 4
    %v2402 = vrot.slane %v2319, 5
    %v2403 = vsel %vm2367, %v2401, %v2402
    %v2404 = vrot.slane %v2318, 5
    %v2405 = vrot.slane %v2404, 4
    %v2406 = vrot.slane %v2320, 5
    %v2407 = vsel %vm2367, %v2405, %v2406
    %v2408 = vrot.slane %v2321, 5
    %v2409 = vrot.slane %v2408, 4
    %v2410 = vrot.slane %v2323, 5
    %v2411 = vsel %vm2367, %v2409, %v2410
    %v2412 = vrot.slane %v2322, 5
    %v2413 = vrot.slane %v2412, 4
    %v2414 = vrot.slane %v2324, 5
    %v2415 = vsel %vm2367, %v2413, %v2414
    %v2416 = vrot.slane %v2325, 5
    %v2417 = vrot.slane %v2416, 4
    %v2418 = vrot.slane %v2327, 5
    %v2419 = vsel %vm2367, %v2417, %v2418
    %v2420 = vrot.slane %v2326, 5
    %v2421 = vrot.slane %v2420, 4
    %v2422 = vrot.slane %v2328, 5
    %v2423 = vsel %vm2367, %v2421, %v2422
    %v2424 = vrot.slane %v2329, 5
    %v2425 = vrot.slane %v2424, 4
    %v2426 = vrot.slane %v2331, 5
    %v2427 = vsel %vm2367, %v2425, %v2426
    %v2428 = vrot.slane %v2330, 5
    %v2429 = vrot.slane %v2428, 4
    %v2430 = vrot.slane %v2332, 5
    %v2431 = vsel %vm2367, %v2429, %v2430
    %v2432 = vrot.slane %v2333, 5
    %v2433 = vrot.slane %v2432, 4
    %v2434 = vrot.slane %v2335, 5
    %v2435 = vsel %vm2367, %v2433, %v2434
    %v2436 = vrot.slane %v2334, 5
    %v2437 = vrot.slane %v2436, 4
    %v2438 = vrot.slane %v2336, 5
    %v2439 = vsel %vm2367, %v2437, %v2438
    %v2440 = vrot.slane %v2337, 5
    %v2441 = vrot.slane %v2440, 4
    %v2442 = vrot.slane %v2339, 5
    %v2443 = vsel %vm2367, %v2441, %v2442
    %v2444 = vrot.slane %v2338, 5
    %v2445 = vrot.slane %v2444, 4
    %v2446 = vrot.slane %v2340, 5
    %v2447 = vsel %vm2367, %v2445, %v2446
    %v2448 = vrot.slane %v2341, 5
    %v2449 = vrot.slane %v2448, 4
    %v2450 = vrot.slane %v2343, 5
    %v2451 = vsel %vm2367, %v2449, %v2450
    %v2452 = vrot.slane %v2342, 5
    %v2453 = vrot.slane %v2452, 4
    %v2454 = vrot.slane %v2344, 5
    %v2455 = vsel %vm2367, %v2453, %v2454
    %v2456 = vrot.slane %v2345, 5
    %v2457 = vrot.slane %v2456, 4
    %v2458 = vrot.slane %v2347, 5
    %v2459 = vsel %vm2367, %v2457, %v2458
    %v2460 = vrot.slane %v2346, 5
    %v2461 = vrot.slane %v2460, 4
    %v2462 = vrot.slane %v2348, 5
    %v2463 = vsel %vm2367, %v2461, %v2462
    %v2464 = vrot.slane %v2349, 5
    %v2465 = vrot.slane %v2464, 4
    %v2466 = vrot.slane %v2351, 5
    %v2467 = vsel %vm2367, %v2465, %v2466
    %v2468 = vrot.slane %v2350, 5
    %v2469 = vrot.slane %v2468, 4
    %v2470 = vrot.slane %v2352, 5
    %v2471 = vsel %vm2367, %v2469, %v2470
    %v2472 = vrot.slane %v2353, 5
    %v2473 = vrot.slane %v2472, 4
    %v2474 = vrot.slane %v2355, 5
    %v2475 = vsel %vm2367, %v2473, %v2474
    %v2476 = vrot.slane %v2354, 5
    %v2477 = vrot.slane %v2476, 4
    %v2478 = vrot.slane %v2356, 5
    %v2479 = vsel %vm2367, %v2477, %v2478
    %v2480 = vrot.slane %v2357, 5
    %v2481 = vrot.slane %v2480, 4
    %v2482 = vrot.slane %v2359, 5
    %v2483 = vsel %vm2367, %v2481, %v2482
    %v2484 = vrot.slane %v2358, 5
    %v2485 = vrot.slane %v2484, 4
    %v2486 = vrot.slane %v2360, 5
    %v2487 = vsel %vm2367, %v2485, %v2486
    %v2488 = vrot.slane %v2361, 5
    %v2489 = vrot.slane %v2488, 4
    %v2490 = vrot.slane %v2363, 5
    %v2491 = vsel %vm2367, %v2489, %v2490
    %v2492 = vrot.slane %v2362, 5
    %v2493 = vrot.slane %v2492, 4
    %v2494 = vrot.slane %v2364, 5
    %v2495 = vsel %vm2367, %v2493, %v2494
    %v2496 = vunpack.c.l.b16 %v2371
    %v2497 = vunpack.c.h.b16 %v2371
    %v2498 = vunpack.c.l.b16 %v2375
    %v2499 = vunpack.c.l.b16 %v2379
    %v2500 = vunpack.c.h.b16 %v2379
    %v2501 = vunpack.c.l.b16 %v2383
    %v2502 = vunpack.c.l.b16 %v2387
    %v2503 = vunpack.c.h.b16 %v2387
    %v2504 = vunpack.c.l.b16 %v2391
    %v2505 = vunpack.c.l.b16 %v2395
    %v2506 = vunpack.c.h.b16 %v2395
    %v2507 = vunpack.c.l.b16 %v2399
    %v2508 = vunpack.c.l.b16 %v2403
    %v2509 = vunpack.c.h.b16 %v2403
    %v2510 = vunpack.c.l.b16 %v2407
    %v2511 = vunpack.c.l.b16 %v2411
    %v2512 = vunpack.c.h.b16 %v2411
    %v2513 = vunpack.c.l.b16 %v2415
    %v2514 = vunpack.c.l.b16 %v2419
    %v2515 = vunpack.c.h.b16 %v2419
    %v2516 = vunpack.c.l.b16 %v2423
    %v2517 = vunpack.c.l.b16 %v2427
    %v2518 = vunpack.c.h.b16 %v2427
    %v2519 = vunpack.c.l.b16 %v2431
    %v2520 = vunpack.c.l.b16 %v2435
    %v2521 = vunpack.c.h.b16 %v2435
    %v2522 = vunpack.c.l.b16 %v2439
    %v2523 = vunpack.c.l.b16 %v2443
    %v2524 = vunpack.c.h.b16 %v2443
    %v2525 = vunpack.c.l.b16 %v2447
    %v2526 = vunpack.c.l.b16 %v2451
    %v2527 = vunpack.c.h.b16 %v2451
    %v2528 = vunpack.c.l.b16 %v2455
    %v2529 = vunpack.c.l.b16 %v2459
    %v2530 = vunpack.c.h.b16 %v2459
    %v2531 = vunpack.c.l.b16 %v2463
    %v2532 = vunpack.c.l.b16 %v2467
    %v2533 = vunpack.c.h.b16 %v2467
    %v2534 = vunpack.c.l.b16 %v2471
    %v2535 = vunpack.c.l.b16 %v2475
    %v2536 = vunpack.c.h.b16 %v2475
    %v2537 = vunpack.c.l.b16 %v2479
    %v2538 = vunpack.c.l.b16 %v2483
    %v2539 = vunpack.c.h.b16 %v2483
    %v2540 = vunpack.c.l.b16 %v2487
    %v2541 = vunpack.c.l.b16 %v2491
    %v2542 = vunpack.c.h.b16 %v2491
    %v2543 = vunpack.c.l.b16 %v2495
    %v2544 = vpack.c.b16 %v2499, %v2496
    %v2545 = vpack.c.b16 %v2500, %v2497
    %v2546 = vpack.c.b16 %v2501, %v2498
    %v2547 = vpack.c.b16 %v2505, %v2502
    %v2548 = vpack.c.b16 %v2506, %v2503
    %v2549 = vpack.c.b16 %v2507, %v2504
    %v2550 = vpack.c.b16 %v2511, %v2508
    %v2551 = vpack.c.b16 %v2512, %v2509
    %v2552 = vpack.c.b16 %v2513, %v2510
    %v2553 = vpack.c.b16 %v2517, %v2514
    %v2554 = vpack.c.b16 %v2518, %v2515
    %v2555 = vpack.c.b16 %v2519, %v2516
    %v2556 = vpack.c.b16 %v2523, %v2520
    %v2557 = vpack.c.b16 %v2524, %v2521
    %v2558 = vpack.c.b16 %v2525, %v2522
    %v2559 = vpack.c.b16 %v2529, %v2526
    %v2560 = vpack.c.b16 %v2530, %v2527
    %v2561 = vpack.c.b16 %v2531, %v2528
    %v2562 = vpack.c.b16 %v2535, %v2532
    %v2563 = vpack.c.b16 %v2536, %v2533
    %v2564 = vpack.c.b16 %v2537, %v2534
    %v2565 = vpack.c.b16 %v2541, %v2538
    %v2566 = vpack.c.b16 %v2542, %v2539
    %v2567 = vpack.c.b16 %v2543, %v2540
    %v2640 = vunpack.c.l.b16 %v2253
    %v2641 = vunpack.c.l.b16 %v2254
    %v2642 = vunpack.c.l.b16 %v2255
    %v2643 = vunpack.c.l.b16 %v2256
    %v2644 = vunpack.c.l.b16 %v2257
    %v2645 = vunpack.c.l.b16 %v2258
    %v2646 = vunpack.c.l.b16 %v2259
    %v2647 = vunpack.c.l.b16 %v2260
    %v2648 = vunpack.c.l.b16 %v2261
    %v2649 = vunpack.c.l.b16 %v2262
    %v2650 = vunpack.c.l.b16 %v2263
    %v2651 = vunpack.c.l.b16 %v2264
    %v2652 = vunpack.c.l.b16 %v2265
    %v2653 = vunpack.c.l.b16 %v2266
    %v2654 = vunpack.c.l.b16 %v2267
    %v2655 = vunpack.c.l.b16 %v2268
    %v2656 = vunpack.c.l.b16 %v2269
    %v2657 = vunpack.c.l.b16 %v2270
    %v2658 = vunpack.c.l.b16 %v2271
    %v2659 = vunpack.c.l.b16 %v2272
    %v2660 = vunpack.c.l.b16 %v2273
    %v2661 = vunpack.c.l.b16 %v2274
    %v2662 = vunpack.c.l.b16 %v2275
    %v2663 = vunpack.c.l.b16 %v2276
    %v2664 = vunpack.c.l.b16 %v2277
    %v2665 = vunpack.c.l.b16 %v2278
    %v2666 = vunpack.c.l.b16 %v2279
    %v2667 = vunpack.c.l.b16 %v2280
    %v2668 = vunpack.c.l.b16 %v2281
    %v2669 = vunpack.c.l.b16 %v2282
    %v2670 = vunpack.c.l.b16 %v2283
    %v2671 = vunpack.c.l.b16 %v2284
    %v2672 = vunpack.c.l.b16 %v2285
    %v2673 = vunpack.c.l.b16 %v2286
    %v2674 = vunpack.c.l.b16 %v2287
    %v2675 = vunpack.c.l.b16 %v2288
    %v2676 = vunpack.c.l.b16 %v2289
    %v2677 = vunpack.c.l.b16 %v2290
    %v2678 = vunpack.c.l.b16 %v2291
    %v2679 = vunpack.c.l.b16 %v2292
    %v2680 = vunpack.c.l.b16 %v2293
    %v2681 = vunpack.c.l.b16 %v2294
    %v2682 = vunpack.c.l.b16 %v2295
    %v2683 = vunpack.c.l.b16 %v2296
    %v2684 = vunpack.c.l.b16 %v2297
    %v2685 = vunpack.c.l.b16 %v2298
    %v2686 = vunpack.c.l.b16 %v2299
    %v2687 = vunpack.c.l.b16 %v2300
    %v2688 = vpack.c.b16 %v2641, %v2640
    %v2689 = vpack.c.b16 %v2643, %v2642
    %v2690 = vpack.c.b16 %v2645, %v2644
    %v2691 = vpack.c.b16 %v2647, %v2646
    %v2692 = vpack.c.b16 %v2649, %v2648
    %v2693 = vpack.c.b16 %v2651, %v2650
    %v2694 = vpack.c.b16 %v2653, %v2652
    %v2695 = vpack.c.b16 %v2655, %v2654
    %v2696 = vpack.c.b16 %v2657, %v2656
    %v2697 = vpack.c.b16 %v2659, %v2658
    %v2698 = vpack.c.b16 %v2661, %v2660
    %v2699 = vpack.c.b16 %v2663, %v2662
    %v2700 = vpack.c.b16 %v2665, %v2664
    %v2701 = vpack.c.b16 %v2667, %v2666
    %v2702 = vpack.c.b16 %v2669, %v2668
    %v2703 = vpack.c.b16 %v2671, %v2670
    %v2704 = vpack.c.b16 %v2673, %v2672
    %v2705 = vpack.c.b16 %v2675, %v2674
    %v2706 = vpack.c.b16 %v2677, %v2676
    %v2707 = vpack.c.b16 %v2679, %v2678
    %v2708 = vpack.c.b16 %v2681, %v2680
    %v2709 = vpack.c.b16 %v2683, %v2682
    %v2710 = vpack.c.b16 %v2685, %v2684
    %v2711 = vpack.c.b16 %v2687, %v2686
    %2736 = vmatpush.bf16.msra.mxu0 %v2695
    %2737 = vmatpush.bf16.msra.mxu0 %v2694
    %2738 = vmatpush.bf16.msra.mxu0 %v2693
    %2739 = vmatpush.bf16.msra.mxu0 %v2692
    %2740 = vmatpush.bf16.msra.mxu0 %v2691
    %2741 = vmatpush.bf16.msra.mxu0 %v2690
    %2742 = vmatpush.bf16.msra.mxu0 %v2689
    %2743 = vmatpush.bf16.msra.mxu0 %v2688
    %2744 = vmatmul.bf16.gmra.mxu0 %v2544
    %v2745 = vpop.f32.mrf.mxu0
    %v2746 = vadd.f32 0.0, %v2745
    %v2747 = vpop.f32.mrf.mxu0
    %v2748 = vadd.f32 0.0, %v2747
    %2749 = vmatmul.bf16.gmra.mxu0 %v2547
    %v2750 = vpop.f32.mrf.mxu0
    %v2751 = vadd.f32 0.0, %v2750
    %v2752 = vpop.f32.mrf.mxu0
    %v2753 = vadd.f32 0.0, %v2752
    %2754 = vmatmul.bf16.gmra.mxu0 %v2550
    %v2755 = vpop.f32.mrf.mxu0
    %v2756 = vadd.f32 0.0, %v2755
    %v2757 = vpop.f32.mrf.mxu0
    %v2758 = vadd.f32 0.0, %v2757
    %2759 = vmatmul.bf16.gmra.mxu0 %v2553
    %v2760 = vpop.f32.mrf.mxu0
    %v2761 = vadd.f32 0.0, %v2760
    %v2762 = vpop.f32.mrf.mxu0
    %v2763 = vadd.f32 0.0, %v2762
    %2764 = vmatmul.bf16.gmra.mxu0 %v2556
    %v2765 = vpop.f32.mrf.mxu0
    %v2766 = vadd.f32 0.0, %v2765
    %v2767 = vpop.f32.mrf.mxu0
    %v2768 = vadd.f32 0.0, %v2767
    %2769 = vmatmul.bf16.gmra.mxu0 %v2559
    %v2770 = vpop.f32.mrf.mxu0
    %v2771 = vadd.f32 0.0, %v2770
    %v2772 = vpop.f32.mrf.mxu0
    %v2773 = vadd.f32 0.0, %v2772
    %2774 = vmatmul.bf16.gmra.mxu0 %v2562
    %v2775 = vpop.f32.mrf.mxu0
    %v2776 = vadd.f32 0.0, %v2775
    %v2777 = vpop.f32.mrf.mxu0
    %v2778 = vadd.f32 0.0, %v2777
    %2779 = vmatmul.bf16.gmra.mxu0 %v2565
    %v2780 = vpop.f32.mrf.mxu0
    %v2781 = vadd.f32 0.0, %v2780
    %v2782 = vpop.f32.mrf.mxu0
    %v2783 = vadd.f32 0.0, %v2782
    %2784 = vdwg.mxu0
    %2785 = vmatpush.bf16.msra.mxu0 %v2703
    %2786 = vmatpush.bf16.msra.mxu0 %v2702
    %2787 = vmatpush.bf16.msra.mxu0 %v2701
    %2788 = vmatpush.bf16.msra.mxu0 %v2700
    %2789 = vmatpush.bf16.msra.mxu0 %v2699
    %2790 = vmatpush.bf16.msra.mxu0 %v2698
    %2791 = vmatpush.bf16.msra.mxu0 %v2697
    %2792 = vmatpush.bf16.msra.mxu0 %v2696
    %2793 = vmatmul.bf16.gmra.mxu0 %v2545
    %v2794 = vpop.f32.mrf.mxu0
    %v2795 = vadd.f32 %v2746, %v2794
    %v2796 = vpop.f32.mrf.mxu0
    %v2797 = vadd.f32 %v2748, %v2796
    %2798 = vmatmul.bf16.gmra.mxu0 %v2548
    %v2799 = vpop.f32.mrf.mxu0
    %v2800 = vadd.f32 %v2751, %v2799
    %v2801 = vpop.f32.mrf.mxu0
    %v2802 = vadd.f32 %v2753, %v2801
    %2803 = vmatmul.bf16.gmra.mxu0 %v2551
    %v2804 = vpop.f32.mrf.mxu0
    %v2805 = vadd.f32 %v2756, %v2804
    %v2806 = vpop.f32.mrf.mxu0
    %v2807 = vadd.f32 %v2758, %v2806
    %2808 = vmatmul.bf16.gmra.mxu0 %v2554
    %v2809 = vpop.f32.mrf.mxu0
    %v2810 = vadd.f32 %v2761, %v2809
    %v2811 = vpop.f32.mrf.mxu0
    %v2812 = vadd.f32 %v2763, %v2811
    %2813 = vmatmul.bf16.gmra.mxu0 %v2557
    %v2814 = vpop.f32.mrf.mxu0
    %v2815 = vadd.f32 %v2766, %v2814
    %v2816 = vpop.f32.mrf.mxu0
    %v2817 = vadd.f32 %v2768, %v2816
    %2818 = vmatmul.bf16.gmra.mxu0 %v2560
    %v2819 = vpop.f32.mrf.mxu0
    %v2820 = vadd.f32 %v2771, %v2819
    %v2821 = vpop.f32.mrf.mxu0
    %v2822 = vadd.f32 %v2773, %v2821
    %2823 = vmatmul.bf16.gmra.mxu0 %v2563
    %v2824 = vpop.f32.mrf.mxu0
    %v2825 = vadd.f32 %v2776, %v2824
    %v2826 = vpop.f32.mrf.mxu0
    %v2827 = vadd.f32 %v2778, %v2826
    %2828 = vmatmul.bf16.gmra.mxu0 %v2566
    %v2829 = vpop.f32.mrf.mxu0
    %v2830 = vadd.f32 %v2781, %v2829
    %v2831 = vpop.f32.mrf.mxu0
    %v2832 = vadd.f32 %v2783, %v2831
    %2833 = vdwg.mxu0
    %2834 = vmatpush.bf16.msra.mxu0 %v2711
    %2835 = vmatpush.bf16.msra.mxu0 %v2710
    %2836 = vmatpush.bf16.msra.mxu0 %v2709
    %2837 = vmatpush.bf16.msra.mxu0 %v2708
    %2838 = vmatpush.bf16.msra.mxu0 %v2707
    %2839 = vmatpush.bf16.msra.mxu0 %v2706
    %2840 = vmatpush.bf16.msra.mxu0 %v2705
    %2841 = vmatpush.bf16.msra.mxu0 %v2704
    %2842 = vmatmul.bf16.gmra.mxu0 %v2546
    %v2843 = vpop.f32.mrf.mxu0
    %v2844 = vadd.f32 %v2795, %v2843
    %v2845 = vpop.f32.mrf.mxu0
    %v2846 = vadd.f32 %v2797, %v2845
    %2847 = vmatmul.bf16.gmra.mxu0 %v2549
    %v2848 = vpop.f32.mrf.mxu0
    %v2849 = vadd.f32 %v2800, %v2848
    %v2850 = vpop.f32.mrf.mxu0
    %v2851 = vadd.f32 %v2802, %v2850
    %2852 = vmatmul.bf16.gmra.mxu0 %v2552
    %v2853 = vpop.f32.mrf.mxu0
    %v2854 = vadd.f32 %v2805, %v2853
    %v2855 = vpop.f32.mrf.mxu0
    %v2856 = vadd.f32 %v2807, %v2855
    %2857 = vmatmul.bf16.gmra.mxu0 %v2555
    %v2858 = vpop.f32.mrf.mxu0
    %v2859 = vadd.f32 %v2810, %v2858
    %v2860 = vpop.f32.mrf.mxu0
    %v2861 = vadd.f32 %v2812, %v2860
    %2862 = vmatmul.bf16.gmra.mxu0 %v2558
    %v2863 = vpop.f32.mrf.mxu0
    %v2864 = vadd.f32 %v2815, %v2863
    %v2865 = vpop.f32.mrf.mxu0
    %v2866 = vadd.f32 %v2817, %v2865
    %2867 = vmatmul.bf16.gmra.mxu0 %v2561
    %v2868 = vpop.f32.mrf.mxu0
    %v2869 = vadd.f32 %v2820, %v2868
    %v2870 = vpop.f32.mrf.mxu0
    %v2871 = vadd.f32 %v2822, %v2870
    %2872 = vmatmul.bf16.gmra.mxu0 %v2564
    %v2873 = vpop.f32.mrf.mxu0
    %v2874 = vadd.f32 %v2825, %v2873
    %v2875 = vpop.f32.mrf.mxu0
    %v2876 = vadd.f32 %v2827, %v2875
    %2877 = vmatmul.bf16.gmra.mxu0 %v2567
    %v2878 = vpop.f32.mrf.mxu0
    %v2879 = vadd.f32 %v2830, %v2878
    %v2880 = vpop.f32.mrf.mxu0
    %v2881 = vadd.f32 %v2832, %v2880
    %2882 = vdwg.mxu0
    %v2883 = vadd.f32 %v2093, %v2844
    %v2884 = vadd.f32 %v2095, %v2846
    %v2885 = vadd.f32 %v2098, %v2849
    %v2886 = vadd.f32 %v2100, %v2851
    %v2887 = vadd.f32 %v2103, %v2854
    %v2888 = vadd.f32 %v2105, %v2856
    %v2889 = vadd.f32 %v2108, %v2859
    %v2890 = vadd.f32 %v2110, %v2861
    %v2891 = vadd.f32 %v2113, %v2864
    %v2892 = vadd.f32 %v2115, %v2866
    %v2893 = vadd.f32 %v2118, %v2869
    %v2894 = vadd.f32 %v2120, %v2871
    %v2895 = vadd.f32 %v2123, %v2874
    %v2896 = vadd.f32 %v2125, %v2876
    %v2897 = vadd.f32 %v2128, %v2879
    %v2898 = vadd.f32 %v2130, %v2881
    %v2899 = vld [vmem:[%s4] sm:$0x1]
    %v2901 = vperm.slane %v2899, 0
    %v2903 = vadd.f32 %v2883, %v2901
    %v2904 = vadd.f32 %v2884, %v2901
    %v2905 = vadd.f32 %v2885, %v2901
    %v2906 = vadd.f32 %v2886, %v2901
    %v2907 = vadd.f32 %v2887, %v2901
    %v2908 = vadd.f32 %v2888, %v2901
    %v2909 = vadd.f32 %v2889, %v2901
    %v2910 = vadd.f32 %v2890, %v2901
    %v2911 = vadd.f32 %v2891, %v2901
    %v2912 = vadd.f32 %v2892, %v2901
    %v2913 = vadd.f32 %v2893, %v2901
    %v2914 = vadd.f32 %v2894, %v2901
    %v2915 = vadd.f32 %v2895, %v2901
    %v2916 = vadd.f32 %v2896, %v2901
    %v2917 = vadd.f32 %v2897, %v2901
    %v2918 = vadd.f32 %v2898, %v2901
    %v2919 = vmax.f32 %v2903, 0.0
    %v2920 = vmax.f32 %v2904, 0.0
    %v2921 = vmax.f32 %v2905, 0.0
    %v2922 = vmax.f32 %v2906, 0.0
    %v2923 = vmax.f32 %v2907, 0.0
    %v2924 = vmax.f32 %v2908, 0.0
    %v2925 = vmax.f32 %v2909, 0.0
    %v2926 = vmax.f32 %v2910, 0.0
    %v2927 = vmax.f32 %v2911, 0.0
    %v2928 = vmax.f32 %v2912, 0.0
    %v2929 = vmax.f32 %v2913, 0.0
    %v2930 = vmax.f32 %v2914, 0.0
    %v2931 = vmax.f32 %v2915, 0.0
    %v2932 = vmax.f32 %v2916, 0.0
    %v2933 = vmax.f32 %v2917, 0.0
    %v2934 = vmax.f32 %v2918, 0.0
    %v2935 = vpack.c.bf16 %v2919, %v2919
    %v2936 = vpack.c.bf16 %v2920, %v2920
    %v2937 = vpack.c.bf16 %v2921, %v2921
    %v2938 = vpack.c.bf16 %v2922, %v2922
    %v2939 = vpack.c.bf16 %v2923, %v2923
    %v2940 = vpack.c.bf16 %v2924, %v2924
    %v2941 = vpack.c.bf16 %v2925, %v2925
    %v2942 = vpack.c.bf16 %v2926, %v2926
    %v2943 = vpack.c.bf16 %v2927, %v2927
    %v2944 = vpack.c.bf16 %v2928, %v2928
    %v2945 = vpack.c.bf16 %v2929, %v2929
    %v2946 = vpack.c.bf16 %v2930, %v2930
    %v2947 = vpack.c.bf16 %v2931, %v2931
    %v2948 = vpack.c.bf16 %v2932, %v2932
    %v2949 = vpack.c.bf16 %v2933, %v2933
    %v2950 = vpack.c.bf16 %v2934, %v2934
    %v2951 = vld [vmem:[%s5] sm:$0xf]
    %v2952 = vld [vmem:[%s5 + $0x4] sm:$0xf]
    %v2953 = vld [vmem:[%s5 + $0x8] sm:$0xf]
    %v2954 = vld [vmem:[%s5 + $0xc] sm:$0xf]
    %v2955 = vld [vmem:[%s5 + $0x10] sm:$0xf]
    %v2956 = vld [vmem:[%s5 + $0x14] sm:$0xf]
    %v2957 = vld [vmem:[%s5 + $0x18] sm:$0xf]
    %v2958 = vld [vmem:[%s5 + $0x1c] sm:$0xf]
    %v2959 = vld [vmem:[%s5 + $0x20] sm:$0xf]
    %v2960 = vld [vmem:[%s5 + $0x24] sm:$0xf]
    %v2961 = vld [vmem:[%s5 + $0x28] sm:$0xf]
    %v2962 = vld [vmem:[%s5 + $0x2c] sm:$0xf]
    %v2963 = vld [vmem:[%s5 + $0x30] sm:$0xf]
    %v2964 = vld [vmem:[%s5 + $0x34] sm:$0xf]
    %v2965 = vld [vmem:[%s5 + $0x38] sm:$0xf]
    %v2966 = vld [vmem:[%s5 + $0x3c] sm:$0xf]
    %v2967 = vld [vmem:[%s6] sm:$0x1]
    %v2969 = vperm.slane %v2967, 0
    %v2987 = vunpack.c.l.b16 %v2935
    %v2988 = vunpack.c.l.b16 %v2936
    %v2989 = vunpack.c.l.b16 %v2937
    %v2990 = vunpack.c.l.b16 %v2938
    %v2991 = vunpack.c.l.b16 %v2939
    %v2992 = vunpack.c.l.b16 %v2940
    %v2993 = vunpack.c.l.b16 %v2941
    %v2994 = vunpack.c.l.b16 %v2942
    %v2995 = vunpack.c.l.b16 %v2943
    %v2996 = vunpack.c.l.b16 %v2944
    %v2997 = vunpack.c.l.b16 %v2945
    %v2998 = vunpack.c.l.b16 %v2946
    %v2999 = vunpack.c.l.b16 %v2947
    %v3000 = vunpack.c.l.b16 %v2948
    %v3001 = vunpack.c.l.b16 %v2949
    %v3002 = vunpack.c.l.b16 %v2950
    %v3003 = vpack.c.b16 %v2988, %v2987
    %v3004 = vpack.c.b16 %v2990, %v2989
    %v3005 = vpack.c.b16 %v2992, %v2991
    %v3006 = vpack.c.b16 %v2994, %v2993
    %v3007 = vpack.c.b16 %v2996, %v2995
    %v3008 = vpack.c.b16 %v2998, %v2997
    %v3009 = vpack.c.b16 %v3000, %v2999
    %v3010 = vpack.c.b16 %v3002, %v3001
    %v3035 = vunpack.c.l.b16 %v2951
    %v3036 = vunpack.c.l.b16 %v2952
    %v3037 = vunpack.c.l.b16 %v2953
    %v3038 = vunpack.c.l.b16 %v2954
    %v3039 = vunpack.c.l.b16 %v2955
    %v3040 = vunpack.c.l.b16 %v2956
    %v3041 = vunpack.c.l.b16 %v2957
    %v3042 = vunpack.c.l.b16 %v2958
    %v3043 = vunpack.c.l.b16 %v2959
    %v3044 = vunpack.c.l.b16 %v2960
    %v3045 = vunpack.c.l.b16 %v2961
    %v3046 = vunpack.c.l.b16 %v2962
    %v3047 = vunpack.c.l.b16 %v2963
    %v3048 = vunpack.c.l.b16 %v2964
    %v3049 = vunpack.c.l.b16 %v2965
    %v3050 = vunpack.c.l.b16 %v2966
    %v3051 = vpack.c.b16 %v3036, %v3035
    %v3052 = vpack.c.b16 %v3038, %v3037
    %v3053 = vpack.c.b16 %v3040, %v3039
    %v3054 = vpack.c.b16 %v3042, %v3041
    %v3055 = vpack.c.b16 %v3044, %v3043
    %v3056 = vpack.c.b16 %v3046, %v3045
    %v3057 = vpack.c.b16 %v3048, %v3047
    %v3058 = vpack.c.b16 %v3050, %v3049
    %3067 = vmatpush.bf16.msra.mxu0 %v3058
    %3068 = vmatpush.bf16.msra.mxu0 %v3057
    %3069 = vmatpush.bf16.msra.mxu0 %v3056
    %3070 = vmatpush.bf16.msra.mxu0 %v3055
    %3071 = vmatpush.bf16.msra.mxu0 %v3054
    %3072 = vmatpush.bf16.msra.mxu0 %v3053
    %3073 = vmatpush.bf16.msra.mxu0 %v3052
    %3074 = vmatpush.bf16.msra.mxu0 %v3051
    %3075 = vmatmul.bf16.gmra.mxu0 %v3003
    %v3076 = vpop.f32.mrf.mxu0
    %v3077 = vadd.f32 %v2969, %v3076
    %v3078 = vpop.f32.mrf.mxu0
    %v3079 = vadd.f32 %v2969, %v3078
    %3080 = vmatmul.bf16.gmra.mxu0 %v3004
    %v3081 = vpop.f32.mrf.mxu0
    %v3082 = vadd.f32 %v2969, %v3081
    %v3083 = vpop.f32.mrf.mxu0
    %v3084 = vadd.f32 %v2969, %v3083
    %3085 = vmatmul.bf16.gmra.mxu0 %v3005
    %v3086 = vpop.f32.mrf.mxu0
    %v3087 = vadd.f32 %v2969, %v3086
    %v3088 = vpop.f32.mrf.mxu0
    %v3089 = vadd.f32 %v2969, %v3088
    %3090 = vmatmul.bf16.gmra.mxu0 %v3006
    %v3091 = vpop.f32.mrf.mxu0
    %v3092 = vadd.f32 %v2969, %v3091
    %v3093 = vpop.f32.mrf.mxu0
    %v3094 = vadd.f32 %v2969, %v3093
    %3095 = vmatmul.bf16.gmra.mxu0 %v3007
    %v3096 = vpop.f32.mrf.mxu0
    %v3097 = vadd.f32 %v2969, %v3096
    %v3098 = vpop.f32.mrf.mxu0
    %v3099 = vadd.f32 %v2969, %v3098
    %3100 = vmatmul.bf16.gmra.mxu0 %v3008
    %v3101 = vpop.f32.mrf.mxu0
    %v3102 = vadd.f32 %v2969, %v3101
    %v3103 = vpop.f32.mrf.mxu0
    %v3104 = vadd.f32 %v2969, %v3103
    %3105 = vmatmul.bf16.gmra.mxu0 %v3009
    %v3106 = vpop.f32.mrf.mxu0
    %v3107 = vadd.f32 %v2969, %v3106
    %v3108 = vpop.f32.mrf.mxu0
    %v3109 = vadd.f32 %v2969, %v3108
    %3110 = vmatmul.bf16.gmra.mxu0 %v3010
    %v3111 = vpop.f32.mrf.mxu0
    %v3112 = vadd.f32 %v2969, %v3111
    %v3113 = vpop.f32.mrf.mxu0
    %v3114 = vadd.f32 %v2969, %v3113
    %3115 = vdwg.mxu0
    %v3116 = vunpack.c.l.bf16 %v44
    %v3117 = vunpack.c.l.bf16 %v45
    %v3118 = vunpack.c.l.bf16 %v46
    %v3119 = vunpack.c.l.bf16 %v47
    %v3120 = vunpack.c.l.bf16 %v48
    %v3121 = vunpack.c.l.bf16 %v49
    %v3122 = vunpack.c.l.bf16 %v50
    %v3123 = vunpack.c.l.bf16 %v51
    %v3124 = vunpack.c.l.bf16 %v52
    %v3125 = vunpack.c.l.bf16 %v53
    %v3126 = vunpack.c.l.bf16 %v54
    %v3127 = vunpack.c.l.bf16 %v55
    %v3128 = vunpack.c.l.bf16 %v56
    %v3129 = vunpack.c.l.bf16 %v57
    %v3130 = vunpack.c.l.bf16 %v58
    %v3131 = vunpack.c.l.bf16 %v59
    %v3132 = vadd.f32 %v3077, %v3116
    %v3133 = vadd.f32 %v3079, %v3117
    %v3134 = vadd.f32 %v3082, %v3118
    %v3135 = vadd.f32 %v3084, %v3119
    %v3136 = vadd.f32 %v3087, %v3120
    %v3137 = vadd.f32 %v3089, %v3121
    %v3138 = vadd.f32 %v3092, %v3122
    %v3139 = vadd.f32 %v3094, %v3123
    %v3140 = vadd.f32 %v3097, %v3124
    %v3141 = vadd.f32 %v3099, %v3125
    %v3142 = vadd.f32 %v3102, %v3126
    %v3143 = vadd.f32 %v3104, %v3127
    %v3144 = vadd.f32 %v3107, %v3128
    %v3145 = vadd.f32 %v3109, %v3129
    %v3146 = vadd.f32 %v3112, %v3130
    %v3147 = vadd.f32 %v3114, %v3131
    %v3148 = vmax.f32 %v3132, 0.0
    %v3149 = vmax.f32 %v3133, 0.0
    %v3150 = vmax.f32 %v3134, 0.0
    %v3151 = vmax.f32 %v3135, 0.0
    %v3152 = vmax.f32 %v3136, 0.0
    %v3153 = vmax.f32 %v3137, 0.0
    %v3154 = vmax.f32 %v3138, 0.0
    %v3155 = vmax.f32 %v3139, 0.0
    %v3156 = vmax.f32 %v3140, 0.0
    %v3157 = vmax.f32 %v3141, 0.0
    %v3158 = vmax.f32 %v3142, 0.0
    %v3159 = vmax.f32 %v3143, 0.0
    %v3160 = vmax.f32 %v3144, 0.0
    %v3161 = vmax.f32 %v3145, 0.0
    %v3162 = vmax.f32 %v3146, 0.0
    %v3163 = vmax.f32 %v3147, 0.0
    %v3164 = vpack.c.bf16 %v3148, %v3148
    %v3165 = vpack.c.bf16 %v3149, %v3149
    %v3166 = vpack.c.bf16 %v3150, %v3150
    %v3167 = vpack.c.bf16 %v3151, %v3151
    %v3168 = vpack.c.bf16 %v3152, %v3152
    %v3169 = vpack.c.bf16 %v3153, %v3153
    %v3170 = vpack.c.bf16 %v3154, %v3154
    %v3171 = vpack.c.bf16 %v3155, %v3155
    %v3172 = vpack.c.bf16 %v3156, %v3156
    %v3173 = vpack.c.bf16 %v3157, %v3157
    %v3174 = vpack.c.bf16 %v3158, %v3158
    %v3175 = vpack.c.bf16 %v3159, %v3159
    %v3176 = vpack.c.bf16 %v3160, %v3160
    %v3177 = vpack.c.bf16 %v3161, %v3161
    %v3178 = vpack.c.bf16 %v3162, %v3162
    %v3179 = vpack.c.bf16 %v3163, %v3163
    %3180 = vst [vmem:[#allocation6] sm:$0xf] %v3164
    %3181 = vst [vmem:[#allocation6 + $0x4] sm:$0xf] %v3165
    %3182 = vst [vmem:[#allocation6 + $0x8] sm:$0xf] %v3166
    %3183 = vst [vmem:[#allocation6 + $0xc] sm:$0xf] %v3167
    %3184 = vst [vmem:[#allocation6 + $0x10] sm:$0xf] %v3168
    %3185 = vst [vmem:[#allocation6 + $0x14] sm:$0xf] %v3169
    %3186 = vst [vmem:[#allocation6 + $0x18] sm:$0xf] %v3170
    %3187 = vst [vmem:[#allocation6 + $0x1c] sm:$0xf] %v3171
    %3188 = vst [vmem:[#allocation6 + $0x20] sm:$0xf] %v3172
    %3189 = vst [vmem:[#allocation6 + $0x24] sm:$0xf] %v3173
    %3190 = vst [vmem:[#allocation6 + $0x28] sm:$0xf] %v3174
    %3191 = vst [vmem:[#allocation6 + $0x2c] sm:$0xf] %v3175
    %3192 = vst [vmem:[#allocation6 + $0x30] sm:$0xf] %v3176
    %3193 = vst [vmem:[#allocation6 + $0x34] sm:$0xf] %v3177
    %3194 = vst [vmem:[#allocation6 + $0x38] sm:$0xf] %v3178
    %3195 = vst [vmem:[#allocation6 + $0x3c] sm:$0xf] %v3179
    // Predicated region
    $region34: #{bottleneck_pallas.1} parent=1 // pred_check
      _
    $region35: #{bottleneck_pallas.1} parent=1 // pred_check_branch
      %3197 = sbr.rel (0) target = $region37
    $region36: #{bottleneck_pallas.1} parent=1 // pred_region
      %3199 = vsyncadd [#allocation5], 0
      %s3200 = sshll.u32 [#allocation6], 4
      %s3201 = int_to_ptr.vmem [resolvable:$true] %s3200
      %s3202 = sshll.u32 %s7, 4
      %s3203 = int_to_ptr.hbm [resolvable:$true] %s3202
      %3208 = dma.vmem_to_hbm [thread:$0]  %s3201, 1024, %s3203, [#allocation5], 64, 64, 4
    $region37: #{bottleneck_pallas.1} parent=1 // pred_fallthru
      _
    // Predicated region
    $region38: #{bottleneck_pallas.1} parent=1 // pred_check
      _
    $region39: #{bottleneck_pallas.1} parent=1 // pred_check_branch
      %3210 = sbr.rel (0) target = $region41
    $region40: #{bottleneck_pallas.1} parent=1 // pred_region
      %3212 = dma.done [#allocation5], 1024
    $region41: #{bottleneck_pallas.1} parent=1 // pred_fallthru
      _
    %3213 = vsyncpa [#allocation4], 1
    %3214 = vsyncpa [#allocation5], 1

</llo_original>
